<compile_context>
chip_gen: v5e
topology: v5e:2x2
jax: 0.10.0
libtpu: 0.0.40
codegen_flags: <defaults>
</compile_context>

<pallas_src>
import functools
import math

import jax
import jax.numpy as jnp
from jax import lax
from jax.experimental import pallas as pl
from jax.experimental.pallas import tpu as pltpu


def _pick_tile(dim, candidates=(512, 256, 128, 64, 32, 16, 8)):
    """Largest multiple-of-8 tile that evenly divides `dim`, else the full dim."""
    for t in candidates:
        if dim % t == 0:
            return t
    return dim


def _pick_group(num_heads, da):
    """Smallest head group G (dividing num_heads) with G*da a multiple of 128
    lanes; falls back to all heads (block spans the full d_model dim)."""
    for g in range(1, num_heads + 1):
        if num_heads % g == 0 and (g * da) % 128 == 0:
            return g
    return num_heads


# --------------------------------------------------------------------------
# Kernel 1: full semantics (context + attention weights), tiled over q blocks
# and head groups; K/V for the head group stay resident across the q axis.
# --------------------------------------------------------------------------
def _mha_weights_kernel(q_ref, k_ref, v_ref, o_ref, w_ref, *, G, da, scale):
    ctx_parts = []
    for g in range(G):
        q = q_ref[:, g * da:(g + 1) * da] * scale           # (tq, da), input dtype
        k = k_ref[:, g * da:(g + 1) * da]                   # (m,  da)
        v = v_ref[:, g * da:(g + 1) * da]                   # (m,  da)

        # scores: (tq, m) -- contract the last dim of both operands, no k.T
        s = lax.dot_general(q, k, (((1,), (1,)), ((), ())),
                            preferred_element_type=jnp.float32)
        s_max = jnp.max(s, axis=-1, keepdims=True)
        e = jnp.exp(s - s_max)
        denom = jnp.sum(e, axis=-1, keepdims=True)
        w = e * pl.reciprocal(denom, approx=False)          # (tq, m) f32

        ctx = lax.dot_general(w.astype(v.dtype), v, (((1,), (0,)), ((), ())),
                              preferred_element_type=jnp.float32)
        ctx_parts.append(ctx)
        w_ref[g] = w.astype(w_ref.dtype)

    # single lane-dense store of the whole (tq, G*da) context block
    o_ref[...] = jnp.concatenate(ctx_parts, axis=-1).astype(o_ref.dtype)


# --------------------------------------------------------------------------
# Kernel 2: flash-style online softmax (context only), tiled over q blocks,
# head groups and KV blocks; m_i / l_i / acc live in VMEM scratch.
# --------------------------------------------------------------------------
def _mha_flash_kernel(q_ref, k_ref, v_ref, o_ref, m_sc, l_sc, acc_sc,
                      *, G, da, scale):
    ki = pl.program_id(2)
    nk = pl.num_programs(2)

    @pl.when(ki == 0)
    def _init():
        m_sc[...] = jnp.full(m_sc.shape, -jnp.inf, m_sc.dtype)
        l_sc[...] = jnp.zeros(l_sc.shape, l_sc.dtype)
        acc_sc[...] = jnp.zeros(acc_sc.shape, acc_sc.dtype)

    for g in range(G):
        q = q_ref[:, g * da:(g + 1) * da] * scale           # (tq, da)
        k = k_ref[:, g * da:(g + 1) * da]                   # (tk, da)
        v = v_ref[:, g * da:(g + 1) * da]                   # (tk, da)

        s = lax.dot_general(q, k, (((1,), (1,)), ((), ())),
                            preferred_element_type=jnp.float32)   # (tq, tk)

        m_prev = m_sc[g]                                    # (tq, 1)
        m_new = jnp.maximum(m_prev, jnp.max(s, axis=-1, keepdims=True))
        alpha = jnp.exp(m_prev - m_new)
        p = jnp.exp(s - m_new)                              # (tq, tk) f32

        l_sc[g] = alpha * l_sc[g] + jnp.sum(p, axis=-1, keepdims=True)
        acc_sc[g] = alpha * acc_sc[g] + lax.dot_general(
            p.astype(v.dtype), v, (((1,), (0,)), ((), ())),
            preferred_element_type=jnp.float32)
        m_sc[g] = m_new

    @pl.when(ki == nk - 1)
    def _finalize():
        parts = [acc_sc[g] * pl.reciprocal(l_sc[g], approx=False)
                 for g in range(G)]
        o_ref[...] = jnp.concatenate(parts, axis=-1).astype(o_ref.dtype)


# --------------------------------------------------------------------------
# Wrapper
# --------------------------------------------------------------------------
def multiheaded_attention(query, key, value, num_heads, *,
                          return_weights=True, tq=None, tk=None):
    """MultiheadedAttention.forward. Returns (context, attn_weights) when
    return_weights=True (original module semantics) or (context, None) via the
    flash path otherwise."""
    n, d_model = query.shape
    m, _ = key.shape
    da = d_model // num_heads
    scale = 1.0 / math.sqrt(da)

    G = _pick_group(num_heads, da)        # heads per grid step (G*da lane-dense)
    Gda = G * da
    n_groups = num_heads // G
    tq = tq if tq is not None else _pick_tile(n)

    cparams_common = dict(vmem_limit_bytes=48 * 1024 * 1024)

    if return_weights:
        kernel = functools.partial(_mha_weights_kernel, G=G, da=da, scale=scale)
        context, attn_weights = pl.pallas_call(
            kernel,
            out_shape=(
                jax.ShapeDtypeStruct((n, d_model), query.dtype),
                jax.ShapeDtypeStruct((num_heads, n, m), query.dtype),
            ),
            grid=(n_groups, n // tq),
            in_specs=[
                pl.BlockSpec((tq, Gda), lambda g, qi: (qi, g)),
                pl.BlockSpec((m, Gda), lambda g, qi: (0, g)),
                pl.BlockSpec((m, Gda), lambda g, qi: (0, g)),
            ],
            out_specs=(
                pl.BlockSpec((tq, Gda), lambda g, qi: (qi, g)),
                pl.BlockSpec((G, tq, m), lambda g, qi: (g, qi, 0)),
            ),
            compiler_params=pltpu.CompilerParams(
                dimension_semantics=("parallel", "parallel"),
                **cparams_common),
        )(query, key, value)
        return context, attn_weights

    # Flash path: KV-block axis + online softmax, no (n, m) weights writeback.
    tk = tk if tk is not None else _pick_tile(m)
    kernel = functools.partial(_mha_flash_kernel, G=G, da=da, scale=scale)
    context = pl.pallas_call(
        kernel,
        out_shape=jax.ShapeDtypeStruct((n, d_model), query.dtype),
        grid=(n_groups, n // tq, m // tk),
        in_specs=[
            pl.BlockSpec((tq, Gda), lambda g, qi, ki: (qi, g)),
            pl.BlockSpec((tk, Gda), lambda g, qi, ki: (ki, g)),
            pl.BlockSpec((tk, Gda), lambda g, qi, ki: (ki, g)),
        ],
        out_specs=pl.BlockSpec((tq, Gda), lambda g, qi, ki: (qi, g)),
        scratch_shapes=[
            pltpu.VMEM((G, tq, 1), jnp.float32),   # running max
            pltpu.VMEM((G, tq, 1), jnp.float32),   # running denom
            pltpu.VMEM((G, tq, da), jnp.float32),  # running context acc
        ],
        compiler_params=pltpu.CompilerParams(
            dimension_semantics=("parallel", "parallel", "arbitrary"),
            **cparams_common),
    )(query, key, value)
    return context, None


# --------------------------------------------------------------------------
# Pure-JAX reference (matches the PyTorch module)
# --------------------------------------------------------------------------
def _reference(query, key, value, num_heads):
    n, d_model = query.shape
    m, _ = key.shape
    da = d_model // num_heads
    Qh = query.reshape(n, num_heads, da).transpose(1, 0, 2)
    Kh = key.reshape(m, num_heads, da).transpose(1, 0, 2)
    Vh = value.reshape(m, num_heads, da).transpose(1, 0, 2)
    scores = jnp.einsum("hnd,hmd->hnm", Qh, Kh) / math.sqrt(da)
    w = jax.nn.softmax(scores, axis=-1)
    ctx = jnp.einsum("hnm,hmd->hnd", w, Vh)
    return ctx.transpose(1, 0, 2).reshape(n, d_model), w


if __name__ == "__main__":
    # Small shapes consistent with the module (d_attention = 64 like the
    # default d_model=512/num_heads=8 config; head group G=2 -> 128 lanes).
    d_model = 256
    num_heads = 4
    n = 128   # query rows   (e.g. num_unsensed * patch_len)
    m = 256   # key/value rows (e.g. num_sensors)

    key0 = jax.random.PRNGKey(0)
    kq, kk, kv = jax.random.split(key0, 3)
    query = jax.random.normal(kq, (n, d_model), dtype=jnp.float32)
    key_ = jax.random.normal(kk, (m, d_model), dtype=jnp.float32)
    value = jax.random.normal(kv, (m, d_model), dtype=jnp.float32)

    # Full-semantics path (context + attention weights), as in the PyTorch module.
    context, attn_weights = multiheaded_attention(
        query, key_, value, num_heads, return_weights=True, tq=64)
    # Flash path (context only) -- what the transformer layers actually need;
    # small tiles chosen here to exercise the multi-block online softmax.
    context_flash, _ = multiheaded_attention(
        query, key_, value, num_heads, return_weights=False, tq=64, tk=64)

    jax.block_until_ready((context, attn_weights, context_flash))

    ref_ctx, ref_w = _reference(query, key_, value, num_heads)
    assert context.shape == (n, d_model)
    assert attn_weights.shape == (num_heads, n, m)
    assert jnp.allclose(context, ref_ctx, atol=1e-5, rtol=1e-5)
    assert jnp.allclose(attn_weights, ref_w, atol=1e-5, rtol=1e-5)
    assert jnp.allclose(context_flash, ref_ctx, atol=1e-5, rtol=1e-5)

    print("KERNEL_OK")
</pallas_src>

<mosaic_0001>
module attributes {stable_mosaic.version = 11 : i64} {
  func.func @_mha_weights_kernel(%arg0: i32, %arg1: i32, %arg2: memref<64x128xf32, #tpu.memory_space<vmem>>, %arg3: memref<256x128xf32, #tpu.memory_space<vmem>>, %arg4: memref<256x128xf32, #tpu.memory_space<vmem>>, %arg5: memref<64x128xf32, #tpu.memory_space<vmem>>, %arg6: memref<2x64x256xf32, #tpu.memory_space<vmem>>) attributes {dimension_semantics = [#tpu.dimension_semantics<parallel>, #tpu.dimension_semantics<parallel>], iteration_bounds = array<i64: 2, 2>, scalar_prefetch = 0 : i64, scratch_operands = 0 : i64, tpu.core_type = #tpu.core_type<tc>, window_params = [{transform_indices = @transform_0, window_bounds = array<i64: 64, 128>}, {transform_indices = @transform_1, window_bounds = array<i64: 256, 128>}, {transform_indices = @transform_2, window_bounds = array<i64: 256, 128>}, {transform_indices = @transform_3, window_bounds = array<i64: 64, 128>}, {transform_indices = @transform_4, window_bounds = array<i64: 2, 64, 256>}]} {
    %c0 = arith.constant 0 : index
    %c0_0 = arith.constant 0 : index
    %0 = vector.load %arg2[%c0, %c0_0] : memref<64x128xf32, #tpu.memory_space<vmem>>, vector<64x64xf32>
    %cst = arith.constant 1.250000e-01 : f32
    %1 = vector.broadcast %cst : f32 to vector<64x64xf32>
    %2 = arith.mulf %0, %1 : vector<64x64xf32>
    %c0_1 = arith.constant 0 : index
    %c0_2 = arith.constant 0 : index
    %3 = vector.load %arg3[%c0_1, %c0_2] : memref<256x128xf32, #tpu.memory_space<vmem>>, vector<256x64xf32>
    %c0_3 = arith.constant 0 : index
    %c0_4 = arith.constant 0 : index
    %4 = vector.load %arg4[%c0_3, %c0_4] : memref<256x128xf32, #tpu.memory_space<vmem>>, vector<256x64xf32>
    %cst_5 = arith.constant dense<0.000000e+00> : vector<64x256xf32>
    %5 = tpu.matmul %2, %3, %cst_5 {dimension_numbers = #tpu.dot_dimension_numbers<[1], [1], [0], [0], [0, 0, 1, 0], [], []>} : vector<64x64xf32>, vector<256x64xf32>, vector<64x256xf32> -> vector<64x256xf32>
    %cst_6 = arith.constant dense<0xFF800000> : vector<64xf32>
    %6 = vector.multi_reduction <maximumf>, %5, %cst_6 [1] : vector<64x256xf32> to vector<64xf32>
    %7 = vector.shape_cast %6 : vector<64xf32> to vector<64x1xf32>
    %8 = vector.broadcast %7 : vector<64x1xf32> to vector<64x256xf32>
    %9 = arith.subf %5, %8 : vector<64x256xf32>
    %10 = math.exp %9 : vector<64x256xf32>
    %cst_7 = arith.constant dense<0.000000e+00> : vector<64xf32>
    %11 = vector.multi_reduction <add>, %10, %cst_7 [1] : vector<64x256xf32> to vector<64xf32>
    %12 = vector.shape_cast %11 : vector<64xf32> to vector<64x1xf32>
    %13 = tpu.reciprocal %12 : vector<64x1xf32> -> vector<64x1xf32>
    %14 = vector.broadcast %13 : vector<64x1xf32> to vector<64x256xf32>
    %15 = arith.mulf %10, %14 : vector<64x256xf32>
    %cst_8 = arith.constant dense<0.000000e+00> : vector<64x64xf32>
    %16 = tpu.matmul %15, %4, %cst_8 {dimension_numbers = #tpu.dot_dimension_numbers<[1], [0], [0], [1], [0, 0, 1, 1], [], []>} : vector<64x256xf32>, vector<256x64xf32>, vector<64x64xf32> -> vector<64x64xf32>
    %c0_9 = arith.constant 0 : index
    %c0_10 = arith.constant 0 : index
    %c0_11 = arith.constant 0 : index
    %17 = vector.load %arg6[%c0_9, %c0_10, %c0_11] : memref<2x64x256xf32, #tpu.memory_space<vmem>>, vector<1x64x256xf32>
    %18 = vector.shape_cast %17 : vector<1x64x256xf32> to vector<64x256xf32>
    %19 = vector.shape_cast %15 : vector<64x256xf32> to vector<1x64x256xf32>
    tpu.vector_store %arg6[%c0_9, %c0_10, %c0_11], %19 {strides = array<i32>} : memref<2x64x256xf32, #tpu.memory_space<vmem>>, vector<1x64x256xf32>,
    %c0_12 = arith.constant 0 : index
    %c64 = arith.constant 64 : index
    %20 = vector.load %arg2[%c0_12, %c64] : memref<64x128xf32, #tpu.memory_space<vmem>>, vector<64x64xf32>
    %cst_13 = arith.constant 1.250000e-01 : f32
    %21 = vector.broadcast %cst_13 : f32 to vector<64x64xf32>
    %22 = arith.mulf %20, %21 : vector<64x64xf32>
    %c0_14 = arith.constant 0 : index
    %c64_15 = arith.constant 64 : index
    %23 = vector.load %arg3[%c0_14, %c64_15] : memref<256x128xf32, #tpu.memory_space<vmem>>, vector<256x64xf32>
    %c0_16 = arith.constant 0 : index
    %c64_17 = arith.constant 64 : index
    %24 = vector.load %arg4[%c0_16, %c64_17] : memref<256x128xf32, #tpu.memory_space<vmem>>, vector<256x64xf32>
    %cst_18 = arith.constant dense<0.000000e+00> : vector<64x256xf32>
    %25 = tpu.matmul %22, %23, %cst_18 {dimension_numbers = #tpu.dot_dimension_numbers<[1], [1], [0], [0], [0, 0, 1, 0], [], []>} : vector<64x64xf32>, vector<256x64xf32>, vector<64x256xf32> -> vector<64x256xf32>
    %cst_19 = arith.constant dense<0xFF800000> : vector<64xf32>
    %26 = vector.multi_reduction <maximumf>, %25, %cst_19 [1] : vector<64x256xf32> to vector<64xf32>
    %27 = vector.shape_cast %26 : vector<64xf32> to vector<64x1xf32>
    %28 = vector.broadcast %27 : vector<64x1xf32> to vector<64x256xf32>
    %29 = arith.subf %25, %28 : vector<64x256xf32>
    %30 = math.exp %29 : vector<64x256xf32>
    %cst_20 = arith.constant dense<0.000000e+00> : vector<64xf32>
    %31 = vector.multi_reduction <add>, %30, %cst_20 [1] : vector<64x256xf32> to vector<64xf32>
    %32 = vector.shape_cast %31 : vector<64xf32> to vector<64x1xf32>
    %33 = tpu.reciprocal %32 : vector<64x1xf32> -> vector<64x1xf32>
    %34 = vector.broadcast %33 : vector<64x1xf32> to vector<64x256xf32>
    %35 = arith.mulf %30, %34 : vector<64x256xf32>
    %cst_21 = arith.constant dense<0.000000e+00> : vector<64x64xf32>
    %36 = tpu.matmul %35, %24, %cst_21 {dimension_numbers = #tpu.dot_dimension_numbers<[1], [0], [0], [1], [0, 0, 1, 1], [], []>} : vector<64x256xf32>, vector<256x64xf32>, vector<64x64xf32> -> vector<64x64xf32>
    %c1 = arith.constant 1 : index
    %c0_22 = arith.constant 0 : index
    %c0_23 = arith.constant 0 : index
    %37 = vector.load %arg6[%c1, %c0_22, %c0_23] : memref<2x64x256xf32, #tpu.memory_space<vmem>>, vector<1x64x256xf32>
    %38 = vector.shape_cast %37 : vector<1x64x256xf32> to vector<64x256xf32>
    %39 = vector.shape_cast %35 : vector<64x256xf32> to vector<1x64x256xf32>
    tpu.vector_store %arg6[%c1, %c0_22, %c0_23], %39 {strides = array<i32>} : memref<2x64x256xf32, #tpu.memory_space<vmem>>, vector<1x64x256xf32>,
    %40 = tpu.concatenate %16, %36 in 1 : vector<64x64xf32>, vector<64x64xf32> -> vector<64x128xf32>
    %c0_24 = arith.constant 0 : index
    %c0_25 = arith.constant 0 : index
    %41 = vector.load %arg5[%c0_24, %c0_25] : memref<64x128xf32, #tpu.memory_space<vmem>>, vector<64x128xf32>
    tpu.vector_store %arg5[%c0_24, %c0_25], %40 {strides = array<i32>} : memref<64x128xf32, #tpu.memory_space<vmem>>, vector<64x128xf32>,
    return
  }
  func.func @transform_0(%arg0: i32, %arg1: i32) -> (i32, i32) {
    %c0_i32 = arith.constant 0 : i32
    return %arg1, %arg0 : i32, i32
  }
  func.func @transform_1(%arg0: i32, %arg1: i32) -> (i32, i32) {
    %c0_i32 = arith.constant 0 : i32
    %c0_i32_0 = arith.constant 0 : i32
    return %c0_i32, %arg0 : i32, i32
  }
  func.func @transform_2(%arg0: i32, %arg1: i32) -> (i32, i32) {
    %c0_i32 = arith.constant 0 : i32
    %c0_i32_0 = arith.constant 0 : i32
    return %c0_i32, %arg0 : i32, i32
  }
  func.func @transform_3(%arg0: i32, %arg1: i32) -> (i32, i32) {
    %c0_i32 = arith.constant 0 : i32
    return %arg1, %arg0 : i32, i32
  }
  func.func @transform_4(%arg0: i32, %arg1: i32) -> (i32, i32, i32) {
    %c0_i32 = arith.constant 0 : i32
    %c0_i32_0 = arith.constant 0 : i32
    return %arg0, %arg1, %c0_i32 : i32, i32, i32
  }
}

</mosaic_0001>

<llo_original>
// kernel: tpu_custom_call.1
$region0: #{tpu_custom_call.1}
  #allocation0 [shape = 'u32[]', space=smem, size = 0x4, offset = 0x4, fixed_abs, tag = 'smem constant byte address 0x4 - core index']
  #allocation1 [shape = 'u32[72,128]{1,0:T(1,128)}', space=vmem, size = 0x9000, scoped, tag = 'internal scratch']
  #allocation11 [shape = 's32[]', space=sflag, size = 0x4, offset = 0, fixed_abs, tag = 'sflag constant byte address 0x0 - dummy sync flag']
  %s0 = inlined_call_operand.hbm [shape: f32[128,256], index: 0, kind: input, shape index: {}]
  %s1 = inlined_call_operand.hbm [shape: f32[256,256], index: 1, kind: input, shape index: {}]
  %s2 = inlined_call_operand.hbm [shape: f32[256,256], index: 2, kind: input, shape index: {}]
  %s3 = inlined_call_operand.hbm [shape: f32[128,256], index: 3, kind: output, shape index: {0}]
  %s4 = inlined_call_operand.hbm [shape: f32[4,128,256], index: 4, kind: output, shape index: {1}]
  %5 = xla_tuple %s3, %s4
  %s6 = sld [smem:[#allocation0]]
  $region65: #{tpu_custom_call.1} parent=0
    _
  %s8 = ssub.s32 1, %s6
  %s9 = scalar_select 0, %s8, %s6
  $region1: #{tpu_custom_call.1} parent=0
    #allocation2 [shape = 'u8[65536]{0}', space=vmem, size = 0x10000, scoped, tag = 'input window, operand 0']
    #allocation3 [shape = 's32[2]{0}', space=sflag, size = 0x8, scoped, tag = 'scoped memory for tpu_custom_call.1']
    #allocation4 [shape = 's32[2]{0}', space=sflag, size = 0x8, scoped, tag = 'scoped memory for tpu_custom_call.1']
    #allocation5 [shape = 'u8[262144]{0}', space=vmem, size = 0x40000, scoped, tag = 'input window, operand 1']
    #allocation6 [shape = 's32[2]{0}', space=sflag, size = 0x8, scoped, tag = 'scoped memory for tpu_custom_call.1']
    #allocation7 [shape = 'u8[262144]{0}', space=vmem, size = 0x40000, scoped, tag = 'input window, operand 2']
    #allocation8 [shape = 'u8[65536]{0}', space=vmem, size = 0x10000, scoped, tag = 'output window, operand 0']
    #allocation9 [shape = 'u8[262144]{0}', space=vmem, size = 0x40000, scoped, tag = 'output window, operand 1']
    #allocation10 [shape = 's32[2]{0}', space=sflag, size = 0x8, scoped, tag = 'scoped memory for tpu_custom_call.1']
    %10 = vsyncpa [#allocation3], 0
    %s11 = scalar_lea.sflag [#allocation3], 1
    %12 = vsyncpa %s11, 0
    %13 = vsyncpa [#allocation6], 0
    %s14 = scalar_lea.sflag [#allocation6], 1
    %15 = vsyncpa %s14, 0
    %16 = vsyncpa [#allocation4], 0
    %s17 = scalar_lea.sflag [#allocation4], 1
    %18 = vsyncpa %s17, 0
    %19 = vsyncpa [#allocation10], 0
    %s20 = scalar_lea.sflag [#allocation10], 1
    %21 = vsyncpa %s20, 0
    loop: start=0, step=1, limit=6
    $region2: #{tpu_custom_call.1} parent=1 // loop_pre_header
      _
    $region3: #{tpu_custom_call.1} parent=1 // loop_header
      %s23 = sphi 0, %s27
      %p24 = scmp.ge.s32.totalorder %s23, 6
      %s30 = sphi 0, %s42
      %s31 = sphi 0, %s38
      %s32 = sphi 0, %s30
      %s33 = sphi 0, %s31
      %s34 = sphi 0, %s32
      %s35 = sphi 0, %s33
      %s47 = sphi 0, %s49
      %s50 = sphi 0, %s47
      %s51 = sphi 0, %s50
      %s67 = sphi 0, %s51
      %s73 = sphi 0, %s75
      %s76 = sphi 0, %s73
      %s77 = sphi 0, %s76
      %s93 = sphi 0, %s77
      %s99 = sphi 0, %s101
      %s102 = sphi 0, %s99
      %s103 = sphi 0, %s102
      %s119 = sphi 0, %s103
      %s127 = sphi 0, %s129
      %s130 = sphi 0, %s127
      %s131 = sphi 0, %s130
      %s147 = sphi 0, %s131
      %s155 = sphi 0, %s157
      %s158 = sphi 0, %s155
      %s159 = sphi 0, %s158
      %s175 = sphi 0, %s159
    $region4: #{tpu_custom_call.1} parent=1 // loop_header_branch
      %26 = sbr.rel (%p24) target = $region8
    $region5: #{tpu_custom_call.1} parent=1 // loop_body
      %s28 = ssub.s32 %s23, 1
      %s29 = ssub.s32 %s23, 2
      %s36 = sadd.s32 1, %s31
      %p37 = scmp.ge.s32.totalorder %s36, 2
      %s38 = scalar_select %p37, 0, %s36
      %s39 = sadd.s32 1, %s30
      %s40 = scalar_select %p37, %s39, %s30
      %p41 = scmp.ge.s32.totalorder %s40, 2
      %s42 = scalar_select %p41, 0, %s40
      %s43 = ssub.s32 %s31, %s38
      %s44 = ssub.s32 %s30, %s42
      %s45 = sor.u32 %s43, %s44
      %p46 = scmp.eq.s32.totalorder %s45, 0
      %s48 = sadd.s32 %s47, 1
      %s49 = scalar_select %p46, %s47, %s48
      %p52 = pneg %p46
      %p53 = scmp.eq.s32.totalorder %s23, 3
      %p54 = por %p52, %p53
      %p55 = scmp.ne.s32.totalorder %s47, %s50
      %p56 = scmp.eq.s32.totalorder %s23, 0
      %p57 = por %p55, %p56
      %p58 = scmp.ne.s32.totalorder %s47, %s50
      %p59 = scmp.eq.s32.totalorder %s28, 3
      %p60 = por %p58, %p59
      %p61 = scmp.ne.s32.totalorder %s50, %s51
      %p62 = scmp.eq.s32.totalorder %s28, 0
      %p63 = por %p61, %p62
      %p64 = scmp.ne.s32.totalorder %s50, %s51
      %p65 = scmp.eq.s32.totalorder %s29, 3
      %p66 = por %p64, %p65
      %p68 = scmp.ne.s32.totalorder %s51, %s67
      %p69 = scmp.eq.s32.totalorder %s29, 0
      %p70 = por %p68, %p69
      %s71 = ssub.s32 %s30, %s42
      %p72 = scmp.eq.s32.totalorder %s71, 0
      %s74 = sadd.s32 %s73, 1
      %s75 = scalar_select %p72, %s73, %s74
      %p78 = pneg %p72
      %p79 = scmp.eq.s32.totalorder %s23, 3
      %p80 = por %p78, %p79
      %p81 = scmp.ne.s32.totalorder %s73, %s76
      %p82 = scmp.eq.s32.totalorder %s23, 0
      %p83 = por %p81, %p82
      %p84 = scmp.ne.s32.totalorder %s73, %s76
      %p85 = scmp.eq.s32.totalorder %s28, 3
      %p86 = por %p84, %p85
      %p87 = scmp.ne.s32.totalorder %s76, %s77
      %p88 = scmp.eq.s32.totalorder %s28, 0
      %p89 = por %p87, %p88
      %p90 = scmp.ne.s32.totalorder %s76, %s77
      %p91 = scmp.eq.s32.totalorder %s29, 3
      %p92 = por %p90, %p91
      %p94 = scmp.ne.s32.totalorder %s77, %s93
      %p95 = scmp.eq.s32.totalorder %s29, 0
      %p96 = por %p94, %p95
      %s97 = ssub.s32 %s30, %s42
      %p98 = scmp.eq.s32.totalorder %s97, 0
      %s100 = sadd.s32 %s99, 1
      %s101 = scalar_select %p98, %s99, %s100
      %p104 = pneg %p98
      %p105 = scmp.eq.s32.totalorder %s23, 3
      %p106 = por %p104, %p105
      %p107 = scmp.ne.s32.totalorder %s99, %s102
      %p108 = scmp.eq.s32.totalorder %s23, 0
      %p109 = por %p107, %p108
      %p110 = scmp.ne.s32.totalorder %s99, %s102
      %p111 = scmp.eq.s32.totalorder %s28, 3
      %p112 = por %p110, %p111
      %p113 = scmp.ne.s32.totalorder %s102, %s103
      %p114 = scmp.eq.s32.totalorder %s28, 0
      %p115 = por %p113, %p114
      %p116 = scmp.ne.s32.totalorder %s102, %s103
      %p117 = scmp.eq.s32.totalorder %s29, 3
      %p118 = por %p116, %p117
      %p120 = scmp.ne.s32.totalorder %s103, %s119
      %p121 = scmp.eq.s32.totalorder %s29, 0
      %p122 = por %p120, %p121
      %s123 = ssub.s32 %s31, %s38
      %s124 = ssub.s32 %s30, %s42
      %s125 = sor.u32 %s123, %s124
      %p126 = scmp.eq.s32.totalorder %s125, 0
      %s128 = sadd.s32 %s127, 1
      %s129 = scalar_select %p126, %s127, %s128
      %p132 = pneg %p126
      %p133 = scmp.eq.s32.totalorder %s23, 3
      %p134 = por %p132, %p133
      %p135 = scmp.ne.s32.totalorder %s127, %s130
      %p136 = scmp.eq.s32.totalorder %s23, 0
      %p137 = por %p135, %p136
      %p138 = scmp.ne.s32.totalorder %s127, %s130
      %p139 = scmp.eq.s32.totalorder %s28, 3
      %p140 = por %p138, %p139
      %p141 = scmp.ne.s32.totalorder %s130, %s131
      %p142 = scmp.eq.s32.totalorder %s28, 0
      %p143 = por %p141, %p142
      %p144 = scmp.ne.s32.totalorder %s130, %s131
      %p145 = scmp.eq.s32.totalorder %s29, 3
      %p146 = por %p144, %p145
      %p148 = scmp.ne.s32.totalorder %s131, %s147
      %p149 = scmp.eq.s32.totalorder %s29, 0
      %p150 = por %p148, %p149
      %s151 = ssub.s32 %s30, %s42
      %s152 = ssub.s32 %s31, %s38
      %s153 = sor.u32 %s151, %s152
      %p154 = scmp.eq.s32.totalorder %s153, 0
      %s156 = sadd.s32 %s155, 1
      %s157 = scalar_select %p154, %s155, %s156
      %p160 = pneg %p154
      %p161 = scmp.eq.s32.totalorder %s23, 3
      %p162 = por %p160, %p161
      %p163 = scmp.ne.s32.totalorder %s155, %s158
      %p164 = scmp.eq.s32.totalorder %s23, 0
      %p165 = por %p163, %p164
      %p166 = scmp.ne.s32.totalorder %s155, %s158
      %p167 = scmp.eq.s32.totalorder %s28, 3
      %p168 = por %p166, %p167
      %p169 = scmp.ne.s32.totalorder %s158, %s159
      %p170 = scmp.eq.s32.totalorder %s28, 0
      %p171 = por %p169, %p170
      %p172 = scmp.ne.s32.totalorder %s158, %s159
      %p173 = scmp.eq.s32.totalorder %s29, 3
      %p174 = por %p172, %p173
      %p176 = scmp.ne.s32.totalorder %s159, %s175
      %p177 = scmp.eq.s32.totalorder %s29, 0
      %p178 = por %p176, %p177
      %p179 = scmp.le.s32.totalorder 1, %s23
      %p180 = scmp.lt.s32.totalorder %s23, 5
      %p181 = pnand %p179, %p180
      %p182 = pneg %p181
      // Predicated region
      $region9: #{tpu_custom_call.1} parent=5 // pred_check
        _
      $region10: #{tpu_custom_call.1} parent=5 // pred_check_branch
        %184 = sbr.rel (%p181) target = $region12
      $region11: #{tpu_custom_call.1} parent=5 // pred_region
        %s185 = ssub.s32 %s23, 1
      $region12: #{tpu_custom_call.1} parent=5 // pred_fallthru
        _
      %p186 = scmp.lt.s32.totalorder %s23, 4
      // Predicated region
      $region13: #{tpu_custom_call.1} parent=5 // pred_check
        %p187 = pneg %p186
      $region14: #{tpu_custom_call.1} parent=5 // pred_check_branch
        %189 = sbr.rel (%p187) target = $region16
      $region15: #{tpu_custom_call.1} parent=5 // pred_region
        // Predicated region
        $region17: #{tpu_custom_call.1} parent=15 // pred_check
          %p190 = pneg %p57
        $region18: #{tpu_custom_call.1} parent=15 // pred_check_branch
          %192 = sbr.rel (%p190) target = $region20
        $region19: #{tpu_custom_call.1} parent=15 // pred_region
          %s193 = sand.u32 %s47, 1
          %s194 = scalar_lea.sflag [#allocation3], %s193
          %s195 = sand.u32 %s47, 1
          %s196 = smul.addr %s195, 64
          %s197 = scalar_lea.vmem [#allocation2], %s196
          %s198 = smul.u32 8, %s31
          %200 = vsyncadd %s194, 0
          %s201 = smul.addr %s198, 2
          %s202 = sadd.s32 %s30, %s201
          %s203 = smul.addr %s202, 8
          %s204 = scalar_lea.hbm %s0, %s203
          %s205 = sshll.u32 %s204, 4
          %s206 = int_to_ptr.hbm [resolvable:$true] %s205
          %s207 = sshll.u32 %s197, 4
          %s208 = int_to_ptr.vmem [resolvable:$true] %s207
          %213 = dma.hbm_to_vmem [thread:$0]  %s206, 1024, %s208, %s194, 256, 128, 8
        $region20: #{tpu_custom_call.1} parent=15 // pred_fallthru
          _
        // Predicated region
        $region21: #{tpu_custom_call.1} parent=15 // pred_check
          %p214 = pneg %p83
        $region22: #{tpu_custom_call.1} parent=15 // pred_check_branch
          %216 = sbr.rel (%p214) target = $region24
        $region23: #{tpu_custom_call.1} parent=15 // pred_region
          %s217 = sand.u32 %s23, 1
          %s218 = scalar_lea.sflag [#allocation6], %s217
          %s219 = sand.u32 %s73, 1
          %s220 = smul.addr %s219, 256
          %s221 = scalar_lea.vmem [#allocation5], %s220
          %223 = vsyncadd %s218, 0
          %s224 = smul.addr %s30, 8
          %s225 = scalar_lea.hbm %s1, %s224
          %s226 = sshll.u32 %s225, 4
          %s227 = int_to_ptr.hbm [resolvable:$true] %s226
          %s228 = sshll.u32 %s221, 4
          %s229 = int_to_ptr.vmem [resolvable:$true] %s228
          %234 = dma.hbm_to_vmem [thread:$0]  %s227, 4096, %s229, %s218, 256, 128, 8
        $region24: #{tpu_custom_call.1} parent=15 // pred_fallthru
          _
        // Predicated region
        $region25: #{tpu_custom_call.1} parent=15 // pred_check
          %p235 = pneg %p109
        $region26: #{tpu_custom_call.1} parent=15 // pred_check_branch
          %237 = sbr.rel (%p235) target = $region28
        $region27: #{tpu_custom_call.1} parent=15 // pred_region
          %s238 = sand.u32 %s23, 1
          %s239 = scalar_lea.sflag [#allocation6], %s238
          %s240 = sand.u32 %s99, 1
          %s241 = smul.addr %s240, 256
          %s242 = scalar_lea.vmem [#allocation7], %s241
          %244 = vsyncadd %s239, 0
          %s245 = smul.addr %s30, 8
          %s246 = scalar_lea.hbm %s2, %s245
          %s247 = sshll.u32 %s246, 4
          %s248 = int_to_ptr.hbm [resolvable:$true] %s247
          %s249 = sshll.u32 %s242, 4
          %s250 = int_to_ptr.vmem [resolvable:$true] %s249
          %255 = dma.hbm_to_vmem [thread:$0]  %s248, 4096, %s250, %s239, 256, 128, 8
        $region28: #{tpu_custom_call.1} parent=15 // pred_fallthru
          _
      $region16: #{tpu_custom_call.1} parent=5 // pred_fallthru
        _
      %p256 = scmp.le.s32.totalorder 1, %s23
      %p257 = scmp.lt.s32.totalorder %s23, 5
      %p258 = pnand %p256, %p257
      %p259 = pneg %p258
      // Predicated region
      $region29: #{tpu_custom_call.1} parent=5 // pred_check
        _
      $region30: #{tpu_custom_call.1} parent=5 // pred_check_branch
        %261 = sbr.rel (%p258) target = $region32
      $region31: #{tpu_custom_call.1} parent=5 // pred_region
        %s262 = ssub.s32 %s23, 1
        %s263 = sand.u32 %s50, 1
        %s264 = scalar_lea.sflag [#allocation3], %s263
        %s265 = sand.u32 %s50, 1
        %s266 = smul.addr %s265, 64
        %s267 = scalar_lea.vmem [#allocation2], %s266
        // Predicated region
        $region33: #{tpu_custom_call.1} parent=31 // pred_check
          %p268 = pneg %p63
        $region34: #{tpu_custom_call.1} parent=31 // pred_check_branch
          %270 = sbr.rel (%p268) target = $region36
        $region35: #{tpu_custom_call.1} parent=31 // pred_region
          %272 = dma.done %s264, 1024
        $region36: #{tpu_custom_call.1} parent=31 // pred_fallthru
          _
        %s273 = sand.u32 %s28, 1
        %s274 = scalar_lea.sflag [#allocation6], %s273
        %s275 = sand.u32 %s76, 1
        %s276 = smul.addr %s275, 256
        %s277 = scalar_lea.vmem [#allocation5], %s276
        // Predicated region
        $region37: #{tpu_custom_call.1} parent=31 // pred_check
          %p278 = pneg %p89
        $region38: #{tpu_custom_call.1} parent=31 // pred_check_branch
          %280 = sbr.rel (%p278) target = $region40
        $region39: #{tpu_custom_call.1} parent=31 // pred_region
          %282 = dma.done %s274, 4096
        $region40: #{tpu_custom_call.1} parent=31 // pred_fallthru
          _
        %s283 = sand.u32 %s28, 1
        %s284 = scalar_lea.sflag [#allocation6], %s283
        %s285 = sand.u32 %s102, 1
        %s286 = smul.addr %s285, 256
        %s287 = scalar_lea.vmem [#allocation7], %s286
        // Predicated region
        $region41: #{tpu_custom_call.1} parent=31 // pred_check
          %p288 = pneg %p115
        $region42: #{tpu_custom_call.1} parent=31 // pred_check_branch
          %290 = sbr.rel (%p288) target = $region44
        $region43: #{tpu_custom_call.1} parent=31 // pred_region
          %292 = dma.done %s284, 4096
        $region44: #{tpu_custom_call.1} parent=31 // pred_fallthru
          _
        %s293 = sand.u32 %s50, 1
        %s294 = scalar_lea.sflag [#allocation3], %s293
        %s295 = sand.u32 %s50, 1
        %s296 = smul.addr %s295, 64
        %s297 = scalar_lea.vmem [#allocation2], %s296
        %p298 = pneg %p63
        %p299 = pneg %p60
        %s300 = sand.u32 %s28, 1
        %s301 = scalar_lea.sflag [#allocation6], %s300
        %s302 = sand.u32 %s76, 1
        %s303 = smul.addr %s302, 256
        %s304 = scalar_lea.vmem [#allocation5], %s303
        %p305 = pneg %p89
        %p306 = pneg %p86
        %s307 = sand.u32 %s28, 1
        %s308 = scalar_lea.sflag [#allocation6], %s307
        %s309 = sand.u32 %s102, 1
        %s310 = smul.addr %s309, 256
        %s311 = scalar_lea.vmem [#allocation7], %s310
        %p312 = pneg %p115
        %p313 = pneg %p112
        %p314 = pneg %p143
        %p315 = pneg %p140
        %s316 = sand.u32 %s130, 1
        %s317 = scalar_lea.sflag [#allocation4], %s316
        %s318 = sand.u32 %s130, 1
        %s319 = smul.addr %s318, 64
        %s320 = scalar_lea.vmem [#allocation8], %s319
        %p321 = pneg %p171
        %p322 = pneg %p168
        %s323 = sand.u32 %s158, 1
        %s324 = scalar_lea.sflag [#allocation10], %s323
        %s325 = sand.u32 %s158, 1
        %s326 = smul.addr %s325, 256
        %s327 = scalar_lea.vmem [#allocation9], %s326
        %s328 = smul.u32 8, %s33
        %s329 = smul.u32 8, %s33
        %s330 = smul.u32 2, %s32
        %s331 = smul.u32 8, %s33
        %v332 = vld [vmem:[%s267] sm:$0xff]
        %v333 = vld [vmem:[%s267 + $0x8] sm:$0xff]
        %v334 = vld [vmem:[%s267 + $0x10] sm:$0xff]
        %v335 = vld [vmem:[%s267 + $0x18] sm:$0xff]
        %v336 = vld [vmem:[%s267 + $0x20] sm:$0xff]
        %v337 = vld [vmem:[%s267 + $0x28] sm:$0xff]
        %v338 = vld [vmem:[%s267 + $0x30] sm:$0xff]
        %v339 = vld [vmem:[%s267 + $0x38] sm:$0xff]
        %v340 = vmul.f32 %v332, 0.125
        %v341 = vmul.f32 %v333, 0.125
        %v342 = vmul.f32 %v334, 0.125
        %v343 = vmul.f32 %v335, 0.125
        %v344 = vmul.f32 %v336, 0.125
        %v345 = vmul.f32 %v337, 0.125
        %v346 = vmul.f32 %v338, 0.125
        %v347 = vmul.f32 %v339, 0.125
        %v348 = vld [vmem:[%s277] sm:$0xff]
        %v349 = vld [vmem:[%s277 + $0x8] sm:$0xff]
        %v350 = vld [vmem:[%s277 + $0x10] sm:$0xff]
        %v351 = vld [vmem:[%s277 + $0x18] sm:$0xff]
        %v352 = vld [vmem:[%s277 + $0x20] sm:$0xff]
        %v353 = vld [vmem:[%s277 + $0x28] sm:$0xff]
        %v354 = vld [vmem:[%s277 + $0x30] sm:$0xff]
        %v355 = vld [vmem:[%s277 + $0x38] sm:$0xff]
        %v356 = vld [vmem:[%s277 + $0x40] sm:$0xff]
        %v357 = vld [vmem:[%s277 + $0x48] sm:$0xff]
        %v358 = vld [vmem:[%s277 + $0x50] sm:$0xff]
        %v359 = vld [vmem:[%s277 + $0x58] sm:$0xff]
        %v360 = vld [vmem:[%s277 + $0x60] sm:$0xff]
        %v361 = vld [vmem:[%s277 + $0x68] sm:$0xff]
        %v362 = vld [vmem:[%s277 + $0x70] sm:$0xff]
        %v363 = vld [vmem:[%s277 + $0x78] sm:$0xff]
        %v364 = vld [vmem:[%s277 + $0x80] sm:$0xff]
        %v365 = vld [vmem:[%s277 + $0x88] sm:$0xff]
        %v366 = vld [vmem:[%s277 + $0x90] sm:$0xff]
        %v367 = vld [vmem:[%s277 + $0x98] sm:$0xff]
        %v368 = vld [vmem:[%s277 + $0xa0] sm:$0xff]
        %v369 = vld [vmem:[%s277 + $0xa8] sm:$0xff]
        %v370 = vld [vmem:[%s277 + $0xb0] sm:$0xff]
        %v371 = vld [vmem:[%s277 + $0xb8] sm:$0xff]
        %v372 = vld [vmem:[%s277 + $0xc0] sm:$0xff]
        %v373 = vld [vmem:[%s277 + $0xc8] sm:$0xff]
        %v374 = vld [vmem:[%s277 + $0xd0] sm:$0xff]
        %v375 = vld [vmem:[%s277 + $0xd8] sm:$0xff]
        %v376 = vld [vmem:[%s277 + $0xe0] sm:$0xff]
        %v377 = vld [vmem:[%s277 + $0xe8] sm:$0xff]
        %v378 = vld [vmem:[%s277 + $0xf0] sm:$0xff]
        %v379 = vld [vmem:[%s277 + $0xf8] sm:$0xff]
        %v380 = vld [vmem:[%s287] sm:$0xff]
        %v381 = vld [vmem:[%s287 + $0x8] sm:$0xff]
        %v382 = vld [vmem:[%s287 + $0x10] sm:$0xff]
        %v383 = vld [vmem:[%s287 + $0x18] sm:$0xff]
        %v384 = vld [vmem:[%s287 + $0x20] sm:$0xff]
        %v385 = vld [vmem:[%s287 + $0x28] sm:$0xff]
        %v386 = vld [vmem:[%s287 + $0x30] sm:$0xff]
        %v387 = vld [vmem:[%s287 + $0x38] sm:$0xff]
        %v388 = vld [vmem:[%s287 + $0x40] sm:$0xff]
        %v389 = vld [vmem:[%s287 + $0x48] sm:$0xff]
        %v390 = vld [vmem:[%s287 + $0x50] sm:$0xff]
        %v391 = vld [vmem:[%s287 + $0x58] sm:$0xff]
        %v392 = vld [vmem:[%s287 + $0x60] sm:$0xff]
        %v393 = vld [vmem:[%s287 + $0x68] sm:$0xff]
        %v394 = vld [vmem:[%s287 + $0x70] sm:$0xff]
        %v395 = vld [vmem:[%s287 + $0x78] sm:$0xff]
        %v396 = vld [vmem:[%s287 + $0x80] sm:$0xff]
        %v397 = vld [vmem:[%s287 + $0x88] sm:$0xff]
        %v398 = vld [vmem:[%s287 + $0x90] sm:$0xff]
        %v399 = vld [vmem:[%s287 + $0x98] sm:$0xff]
        %v400 = vld [vmem:[%s287 + $0xa0] sm:$0xff]
        %v401 = vld [vmem:[%s287 + $0xa8] sm:$0xff]
        %v402 = vld [vmem:[%s287 + $0xb0] sm:$0xff]
        %v403 = vld [vmem:[%s287 + $0xb8] sm:$0xff]
        %v404 = vld [vmem:[%s287 + $0xc0] sm:$0xff]
        %v405 = vld [vmem:[%s287 + $0xc8] sm:$0xff]
        %v406 = vld [vmem:[%s287 + $0xd0] sm:$0xff]
        %v407 = vld [vmem:[%s287 + $0xd8] sm:$0xff]
        %v408 = vld [vmem:[%s287 + $0xe0] sm:$0xff]
        %v409 = vld [vmem:[%s287 + $0xe8] sm:$0xff]
        %v410 = vld [vmem:[%s287 + $0xf0] sm:$0xff]
        %v411 = vld [vmem:[%s287 + $0xf8] sm:$0xff]
        %vm412 = vcmask 523264
        %v414 = vsel %vm412, %v340, 0
        %v417 = vsel %vm412, %v341, 0
        %v420 = vsel %vm412, %v342, 0
        %v423 = vsel %vm412, %v343, 0
        %v426 = vsel %vm412, %v344, 0
        %v429 = vsel %vm412, %v345, 0
        %v432 = vsel %vm412, %v346, 0
        %v435 = vsel %vm412, %v347, 0
        %v438 = vsel %vm412, %v348, 0
        %v441 = vsel %vm412, %v349, 0
        %v444 = vsel %vm412, %v350, 0
        %v447 = vsel %vm412, %v351, 0
        %v450 = vsel %vm412, %v352, 0
        %v453 = vsel %vm412, %v353, 0
        %v456 = vsel %vm412, %v354, 0
        %v459 = vsel %vm412, %v355, 0
        %v462 = vsel %vm412, %v356, 0
        %v465 = vsel %vm412, %v357, 0
        %v468 = vsel %vm412, %v358, 0
        %v471 = vsel %vm412, %v359, 0
        %v474 = vsel %vm412, %v360, 0
        %v477 = vsel %vm412, %v361, 0
        %v480 = vsel %vm412, %v362, 0
        %v483 = vsel %vm412, %v363, 0
        %v486 = vsel %vm412, %v364, 0
        %v489 = vsel %vm412, %v365, 0
        %v492 = vsel %vm412, %v366, 0
        %v495 = vsel %vm412, %v367, 0
        %v498 = vsel %vm412, %v368, 0
        %v501 = vsel %vm412, %v369, 0
        %v504 = vsel %vm412, %v370, 0
        %v507 = vsel %vm412, %v371, 0
        %v510 = vsel %vm412, %v372, 0
        %v513 = vsel %vm412, %v373, 0
        %v516 = vsel %vm412, %v374, 0
        %v519 = vsel %vm412, %v375, 0
        %v522 = vsel %vm412, %v376, 0
        %v525 = vsel %vm412, %v377, 0
        %v528 = vsel %vm412, %v378, 0
        %v531 = vsel %vm412, %v379, 0
        %533 = vmatpush.xpose.msra.mxu0 %v483
        %534 = vmatpush.xpose.msra.mxu0 %v480
        %535 = vmatpush.xpose.msra.mxu0 %v477
        %536 = vmatpush.xpose.msra.mxu0 %v474
        %537 = vmatpush.xpose.msra.mxu0 %v471
        %538 = vmatpush.xpose.msra.mxu0 %v468
        %539 = vmatpush.xpose.msra.mxu0 %v465
        %540 = vmatpush.xpose.msra.mxu0 %v462
        %541 = vmatpush.xpose.msra.mxu0 %v459
        %542 = vmatpush.xpose.msra.mxu0 %v456
        %543 = vmatpush.xpose.msra.mxu0 %v453
        %544 = vmatpush.xpose.msra.mxu0 %v450
        %545 = vmatpush.xpose.msra.mxu0 %v447
        %546 = vmatpush.xpose.msra.mxu0 %v444
        %547 = vmatpush.xpose.msra.mxu0 %v441
        %548 = vmatpush.xpose.msra.mxu0 %v438
        %549 = vmatmul.f32.gmra.mxu0 %v414
        %v550 = vpop.f32.mrf.mxu0
        %v551 = vadd.f32 0.0, %v550
        %552 = vmatmul.f32.gmra.mxu0 %v417
        %v553 = vpop.f32.mrf.mxu0
        %v554 = vadd.f32 0.0, %v553
        %555 = vmatmul.f32.gmra.mxu0 %v420
        %v556 = vpop.f32.mrf.mxu0
        %v557 = vadd.f32 0.0, %v556
        %558 = vmatmul.f32.gmra.mxu0 %v423
        %v559 = vpop.f32.mrf.mxu0
        %v560 = vadd.f32 0.0, %v559
        %561 = vmatmul.f32.gmra.mxu0 %v426
        %v562 = vpop.f32.mrf.mxu0
        %v563 = vadd.f32 0.0, %v562
        %564 = vmatmul.f32.gmra.mxu0 %v429
        %v565 = vpop.f32.mrf.mxu0
        %v566 = vadd.f32 0.0, %v565
        %567 = vmatmul.f32.gmra.mxu0 %v432
        %v568 = vpop.f32.mrf.mxu0
        %v569 = vadd.f32 0.0, %v568
        %570 = vmatmul.f32.gmra.mxu0 %v435
        %v571 = vpop.f32.mrf.mxu0
        %v572 = vadd.f32 0.0, %v571
        %573 = vdwg.mxu0
        %574 = vmatpush.xpose.msra.mxu0 %v531
        %575 = vmatpush.xpose.msra.mxu0 %v528
        %576 = vmatpush.xpose.msra.mxu0 %v525
        %577 = vmatpush.xpose.msra.mxu0 %v522
        %578 = vmatpush.xpose.msra.mxu0 %v519
        %579 = vmatpush.xpose.msra.mxu0 %v516
        %580 = vmatpush.xpose.msra.mxu0 %v513
        %581 = vmatpush.xpose.msra.mxu0 %v510
        %582 = vmatpush.xpose.msra.mxu0 %v507
        %583 = vmatpush.xpose.msra.mxu0 %v504
        %584 = vmatpush.xpose.msra.mxu0 %v501
        %585 = vmatpush.xpose.msra.mxu0 %v498
        %586 = vmatpush.xpose.msra.mxu0 %v495
        %587 = vmatpush.xpose.msra.mxu0 %v492
        %588 = vmatpush.xpose.msra.mxu0 %v489
        %589 = vmatpush.xpose.msra.mxu0 %v486
        %590 = vmatmul.f32.gmra.mxu0 %v414
        %v591 = vpop.f32.mrf.mxu0
        %v592 = vadd.f32 0.0, %v591
        %593 = vmatmul.f32.gmra.mxu0 %v417
        %v594 = vpop.f32.mrf.mxu0
        %v595 = vadd.f32 0.0, %v594
        %596 = vmatmul.f32.gmra.mxu0 %v420
        %v597 = vpop.f32.mrf.mxu0
        %v598 = vadd.f32 0.0, %v597
        %599 = vmatmul.f32.gmra.mxu0 %v423
        %v600 = vpop.f32.mrf.mxu0
        %v601 = vadd.f32 0.0, %v600
        %602 = vmatmul.f32.gmra.mxu0 %v426
        %v603 = vpop.f32.mrf.mxu0
        %v604 = vadd.f32 0.0, %v603
        %605 = vmatmul.f32.gmra.mxu0 %v429
        %v606 = vpop.f32.mrf.mxu0
        %v607 = vadd.f32 0.0, %v606
        %608 = vmatmul.f32.gmra.mxu0 %v432
        %v609 = vpop.f32.mrf.mxu0
        %v610 = vadd.f32 0.0, %v609
        %611 = vmatmul.f32.gmra.mxu0 %v435
        %v612 = vpop.f32.mrf.mxu0
        %v613 = vadd.f32 0.0, %v612
        %614 = vdwg.mxu0
        %v615 = vmax.f32 %v551, %v592
        %616 = vmax.xlane.f32.xlu0 %v615
        %v617 = vpop.xlane.xlu0 %616
        %v618 = vmax.f32 %v554, %v595
        %619 = vmax.xlane.f32.xlu0 %v618
        %v620 = vpop.xlane.xlu0 %619
        %v621 = vmax.f32 %v557, %v598
        %622 = vmax.xlane.f32.xlu0 %v621
        %v623 = vpop.xlane.xlu0 %622
        %v624 = vmax.f32 %v560, %v601
        %625 = vmax.xlane.f32.xlu0 %v624
        %v626 = vpop.xlane.xlu0 %625
        %v627 = vmax.f32 %v563, %v604
        %628 = vmax.xlane.f32.xlu0 %v627
        %v629 = vpop.xlane.xlu0 %628
        %v630 = vmax.f32 %v566, %v607
        %631 = vmax.xlane.f32.xlu0 %v630
        %v632 = vpop.xlane.xlu0 %631
        %v633 = vmax.f32 %v569, %v610
        %634 = vmax.xlane.f32.xlu0 %v633
        %v635 = vpop.xlane.xlu0 %634
        %v636 = vmax.f32 %v572, %v613
        %637 = vmax.xlane.f32.xlu0 %v636
        %v638 = vpop.xlane.xlu0 %637
        %v639 = vsub.f32 %v551, %v617
        %v640 = vsub.f32 %v592, %v617
        %v641 = vsub.f32 %v554, %v620
        %v642 = vsub.f32 %v595, %v620
        %v643 = vsub.f32 %v557, %v623
        %v644 = vsub.f32 %v598, %v623
        %v645 = vsub.f32 %v560, %v626
        %v646 = vsub.f32 %v601, %v626
        %v647 = vsub.f32 %v563, %v629
        %v648 = vsub.f32 %v604, %v629
        %v649 = vsub.f32 %v566, %v632
        %v650 = vsub.f32 %v607, %v632
        %v651 = vsub.f32 %v569, %v635
        %v652 = vsub.f32 %v610, %v635
        %v653 = vsub.f32 %v572, %v638
        %v654 = vsub.f32 %v613, %v638
        %v655 = vmul.f32 %v639, 1.442695
        %v656 = vpow.pop %v655
        %v657 = vmul.f32 %v640, 1.442695
        %v658 = vpow.pop %v657
        %v659 = vmul.f32 %v641, 1.442695
        %v660 = vpow.pop %v659
        %v661 = vmul.f32 %v642, 1.442695
        %v662 = vpow.pop %v661
        %v663 = vmul.f32 %v643, 1.442695
        %v664 = vpow.pop %v663
        %v665 = vmul.f32 %v644, 1.442695
        %v666 = vpow.pop %v665
        %v667 = vmul.f32 %v645, 1.442695
        %v668 = vpow.pop %v667
        %v669 = vmul.f32 %v646, 1.442695
        %v670 = vpow.pop %v669
        %v671 = vmul.f32 %v647, 1.442695
        %v672 = vpow.pop %v671
        %v673 = vmul.f32 %v648, 1.442695
        %v674 = vpow.pop %v673
        %v675 = vmul.f32 %v649, 1.442695
        %v676 = vpow.pop %v675
        %v677 = vmul.f32 %v650, 1.442695
        %v678 = vpow.pop %v677
        %v679 = vmul.f32 %v651, 1.442695
        %v680 = vpow.pop %v679
        %v681 = vmul.f32 %v652, 1.442695
        %v682 = vpow.pop %v681
        %v683 = vmul.f32 %v653, 1.442695
        %v684 = vpow.pop %v683
        %v685 = vmul.f32 %v654, 1.442695
        %v686 = vpow.pop %v685
        %v687 = vadd.f32 %v656, %v658
        %688 = vadd.xlane.f32.xlu0 %v687
        %v689 = vpop.xlane.xlu0 %688
        %v690 = vadd.f32 %v660, %v662
        %691 = vadd.xlane.f32.xlu0 %v690
        %v692 = vpop.xlane.xlu0 %691
        %v693 = vadd.f32 %v664, %v666
        %694 = vadd.xlane.f32.xlu0 %v693
        %v695 = vpop.xlane.xlu0 %694
        %v696 = vadd.f32 %v668, %v670
        %697 = vadd.xlane.f32.xlu0 %v696
        %v698 = vpop.xlane.xlu0 %697
        %v699 = vadd.f32 %v672, %v674
        %700 = vadd.xlane.f32.xlu0 %v699
        %v701 = vpop.xlane.xlu0 %700
        %v702 = vadd.f32 %v676, %v678
        %703 = vadd.xlane.f32.xlu0 %v702
        %v704 = vpop.xlane.xlu0 %703
        %v705 = vadd.f32 %v680, %v682
        %706 = vadd.xlane.f32.xlu0 %v705
        %v707 = vpop.xlane.xlu0 %706
        %v708 = vadd.f32 %v684, %v686
        %709 = vadd.xlane.f32.xlu0 %v708
        %v710 = vpop.xlane.xlu0 %709
        %v711 = vrcp.pop %v689
        %v712 = vmul.f32 %v689, %v711
        %v713 = vsub.f32 1.0, %v712
        %v714 = vmul.f32 %v711, %v713
        %v715 = vadd.f32 %v711, %v714
        %vm716 = vweird.f32 %v689
        %vm717 = vweird.f32 %v711
        %vm718 = vmor %vm716, %vm717
        %v719 = vsel %vm718, %v711, %v715
        %v720 = vand.u32 2147483647, %v689
        %vm721 = vcmp.eq.f32.partialorder %v720, 8.507059e+37
        %v722 = vand.u32 %v689, 2147483648
        %v723 = vor.u32 1.1754944e-38, %v722
        %v724 = vsel %vm721, %v723, %v719
        %v725 = vrcp.pop %v692
        %v726 = vmul.f32 %v692, %v725
        %v727 = vsub.f32 1.0, %v726
        %v728 = vmul.f32 %v725, %v727
        %v729 = vadd.f32 %v725, %v728
        %vm730 = vweird.f32 %v692
        %vm731 = vweird.f32 %v725
        %vm732 = vmor %vm730, %vm731
        %v733 = vsel %vm732, %v725, %v729
        %v734 = vand.u32 2147483647, %v692
        %vm735 = vcmp.eq.f32.partialorder %v734, 8.507059e+37
        %v736 = vand.u32 %v692, 2147483648
        %v737 = vor.u32 1.1754944e-38, %v736
        %v738 = vsel %vm735, %v737, %v733
        %v739 = vrcp.pop %v695
        %v740 = vmul.f32 %v695, %v739
        %v741 = vsub.f32 1.0, %v740
        %v742 = vmul.f32 %v739, %v741
        %v743 = vadd.f32 %v739, %v742
        %vm744 = vweird.f32 %v695
        %vm745 = vweird.f32 %v739
        %vm746 = vmor %vm744, %vm745
        %v747 = vsel %vm746, %v739, %v743
        %v748 = vand.u32 2147483647, %v695
        %vm749 = vcmp.eq.f32.partialorder %v748, 8.507059e+37
        %v750 = vand.u32 %v695, 2147483648
        %v751 = vor.u32 1.1754944e-38, %v750
        %v752 = vsel %vm749, %v751, %v747
        %v753 = vrcp.pop %v698
        %v754 = vmul.f32 %v698, %v753
        %v755 = vsub.f32 1.0, %v754
        %v756 = vmul.f32 %v753, %v755
        %v757 = vadd.f32 %v753, %v756
        %vm758 = vweird.f32 %v698
        %vm759 = vweird.f32 %v753
        %vm760 = vmor %vm758, %vm759
        %v761 = vsel %vm760, %v753, %v757
        %v762 = vand.u32 2147483647, %v698
        %vm763 = vcmp.eq.f32.partialorder %v762, 8.507059e+37
        %v764 = vand.u32 %v698, 2147483648
        %v765 = vor.u32 1.1754944e-38, %v764
        %v766 = vsel %vm763, %v765, %v761
        %v767 = vrcp.pop %v701
        %v768 = vmul.f32 %v701, %v767
        %v769 = vsub.f32 1.0, %v768
        %v770 = vmul.f32 %v767, %v769
        %v771 = vadd.f32 %v767, %v770
        %vm772 = vweird.f32 %v701
        %vm773 = vweird.f32 %v767
        %vm774 = vmor %vm772, %vm773
        %v775 = vsel %vm774, %v767, %v771
        %v776 = vand.u32 2147483647, %v701
        %vm777 = vcmp.eq.f32.partialorder %v776, 8.507059e+37
        %v778 = vand.u32 %v701, 2147483648
        %v779 = vor.u32 1.1754944e-38, %v778
        %v780 = vsel %vm777, %v779, %v775
        %v781 = vrcp.pop %v704
        %v782 = vmul.f32 %v704, %v781
        %v783 = vsub.f32 1.0, %v782
        %v784 = vmul.f32 %v781, %v783
        %v785 = vadd.f32 %v781, %v784
        %vm786 = vweird.f32 %v704
        %vm787 = vweird.f32 %v781
        %vm788 = vmor %vm786, %vm787
        %v789 = vsel %vm788, %v781, %v785
        %v790 = vand.u32 2147483647, %v704
        %vm791 = vcmp.eq.f32.partialorder %v790, 8.507059e+37
        %v792 = vand.u32 %v704, 2147483648
        %v793 = vor.u32 1.1754944e-38, %v792
        %v794 = vsel %vm791, %v793, %v789
        %v795 = vrcp.pop %v707
        %v796 = vmul.f32 %v707, %v795
        %v797 = vsub.f32 1.0, %v796
        %v798 = vmul.f32 %v795, %v797
        %v799 = vadd.f32 %v795, %v798
        %vm800 = vweird.f32 %v707
        %vm801 = vweird.f32 %v795
        %vm802 = vmor %vm800, %vm801
        %v803 = vsel %vm802, %v795, %v799
        %v804 = vand.u32 2147483647, %v707
        %vm805 = vcmp.eq.f32.partialorder %v804, 8.507059e+37
        %v806 = vand.u32 %v707, 2147483648
        %v807 = vor.u32 1.1754944e-38, %v806
        %v808 = vsel %vm805, %v807, %v803
        %v809 = vrcp.pop %v710
        %v810 = vmul.f32 %v710, %v809
        %v811 = vsub.f32 1.0, %v810
        %v812 = vmul.f32 %v809, %v811
        %v813 = vadd.f32 %v809, %v812
        %vm814 = vweird.f32 %v710
        %vm815 = vweird.f32 %v809
        %vm816 = vmor %vm814, %vm815
        %v817 = vsel %vm816, %v809, %v813
        %v818 = vand.u32 2147483647, %v710
        %vm819 = vcmp.eq.f32.partialorder %v818, 8.507059e+37
        %v820 = vand.u32 %v710, 2147483648
        %v821 = vor.u32 1.1754944e-38, %v820
        %v822 = vsel %vm819, %v821, %v817
        %v823 = vmul.f32 %v656, %v724
        %v824 = vmul.f32 %v658, %v724
        %v825 = vmul.f32 %v660, %v738
        %v826 = vmul.f32 %v662, %v738
        %v827 = vmul.f32 %v664, %v752
        %v828 = vmul.f32 %v666, %v752
        %v829 = vmul.f32 %v668, %v766
        %v830 = vmul.f32 %v670, %v766
        %v831 = vmul.f32 %v672, %v780
        %v832 = vmul.f32 %v674, %v780
        %v833 = vmul.f32 %v676, %v794
        %v834 = vmul.f32 %v678, %v794
        %v835 = vmul.f32 %v680, %v808
        %v836 = vmul.f32 %v682, %v808
        %v837 = vmul.f32 %v684, %v822
        %v838 = vmul.f32 %v686, %v822
        %839 = vmatpush.msra.mxu0 %v395
        %840 = vmatpush.msra.mxu0 %v394
        %841 = vmatpush.msra.mxu0 %v393
        %842 = vmatpush.msra.mxu0 %v392
        %843 = vmatpush.msra.mxu0 %v391
        %844 = vmatpush.msra.mxu0 %v390
        %845 = vmatpush.msra.mxu0 %v389
        %846 = vmatpush.msra.mxu0 %v388
        %847 = vmatpush.msra.mxu0 %v387
        %848 = vmatpush.msra.mxu0 %v386
        %849 = vmatpush.msra.mxu0 %v385
        %850 = vmatpush.msra.mxu0 %v384
        %851 = vmatpush.msra.mxu0 %v383
        %852 = vmatpush.msra.mxu0 %v382
        %853 = vmatpush.msra.mxu0 %v381
        %854 = vmatpush.msra.mxu0 %v380
        %855 = vmatmul.f32.gmra.mxu0 %v823
        %v856 = vpop.f32.mrf.mxu0
        %v857 = vadd.f32 0.0, %v856
        %858 = vmatmul.f32.gmra.mxu0 %v825
        %v859 = vpop.f32.mrf.mxu0
        %v860 = vadd.f32 0.0, %v859
        %861 = vmatmul.f32.gmra.mxu0 %v827
        %v862 = vpop.f32.mrf.mxu0
        %v863 = vadd.f32 0.0, %v862
        %864 = vmatmul.f32.gmra.mxu0 %v829
        %v865 = vpop.f32.mrf.mxu0
        %v866 = vadd.f32 0.0, %v865
        %867 = vmatmul.f32.gmra.mxu0 %v831
        %v868 = vpop.f32.mrf.mxu0
        %v869 = vadd.f32 0.0, %v868
        %870 = vmatmul.f32.gmra.mxu0 %v833
        %v871 = vpop.f32.mrf.mxu0
        %v872 = vadd.f32 0.0, %v871
        %873 = vmatmul.f32.gmra.mxu0 %v835
        %v874 = vpop.f32.mrf.mxu0
        %v875 = vadd.f32 0.0, %v874
        %876 = vmatmul.f32.gmra.mxu0 %v837
        %v877 = vpop.f32.mrf.mxu0
        %v878 = vadd.f32 0.0, %v877
        %879 = vdwg.mxu0
        %880 = vmatpush.msra.mxu0 %v411
        %881 = vmatpush.msra.mxu0 %v410
        %882 = vmatpush.msra.mxu0 %v409
        %883 = vmatpush.msra.mxu0 %v408
        %884 = vmatpush.msra.mxu0 %v407
        %885 = vmatpush.msra.mxu0 %v406
        %886 = vmatpush.msra.mxu0 %v405
        %887 = vmatpush.msra.mxu0 %v404
        %888 = vmatpush.msra.mxu0 %v403
        %889 = vmatpush.msra.mxu0 %v402
        %890 = vmatpush.msra.mxu0 %v401
        %891 = vmatpush.msra.mxu0 %v400
        %892 = vmatpush.msra.mxu0 %v399
        %893 = vmatpush.msra.mxu0 %v398
        %894 = vmatpush.msra.mxu0 %v397
        %895 = vmatpush.msra.mxu0 %v396
        %896 = vmatmul.f32.gmra.mxu0 %v824
        %v897 = vpop.f32.mrf.mxu0
        %v898 = vadd.f32 %v857, %v897
        %899 = vmatmul.f32.gmra.mxu0 %v826
        %v900 = vpop.f32.mrf.mxu0
        %v901 = vadd.f32 %v860, %v900
        %902 = vmatmul.f32.gmra.mxu0 %v828
        %v903 = vpop.f32.mrf.mxu0
        %v904 = vadd.f32 %v863, %v903
        %905 = vmatmul.f32.gmra.mxu0 %v830
        %v906 = vpop.f32.mrf.mxu0
        %v907 = vadd.f32 %v866, %v906
        %908 = vmatmul.f32.gmra.mxu0 %v832
        %v909 = vpop.f32.mrf.mxu0
        %v910 = vadd.f32 %v869, %v909
        %911 = vmatmul.f32.gmra.mxu0 %v834
        %v912 = vpop.f32.mrf.mxu0
        %v913 = vadd.f32 %v872, %v912
        %914 = vmatmul.f32.gmra.mxu0 %v836
        %v915 = vpop.f32.mrf.mxu0
        %v916 = vadd.f32 %v875, %v915
        %917 = vmatmul.f32.gmra.mxu0 %v838
        %v918 = vpop.f32.mrf.mxu0
        %v919 = vadd.f32 %v878, %v918
        %920 = vdwg.mxu0
        %921 = vst [vmem:[%s327] sm:$0xff] %v823
        %922 = vst [vmem:[%s327 + $0x8] sm:$0xff] %v824
        %923 = vst [vmem:[%s327 + $0x10] sm:$0xff] %v825
        %924 = vst [vmem:[%s327 + $0x18] sm:$0xff] %v826
        %925 = vst [vmem:[%s327 + $0x20] sm:$0xff] %v827
        %926 = vst [vmem:[%s327 + $0x28] sm:$0xff] %v828
        %927 = vst [vmem:[%s327 + $0x30] sm:$0xff] %v829
        %928 = vst [vmem:[%s327 + $0x38] sm:$0xff] %v830
        %929 = vst [vmem:[%s327 + $0x40] sm:$0xff] %v831
        %930 = vst [vmem:[%s327 + $0x48] sm:$0xff] %v832
        %931 = vst [vmem:[%s327 + $0x50] sm:$0xff] %v833
        %932 = vst [vmem:[%s327 + $0x58] sm:$0xff] %v834
        %933 = vst [vmem:[%s327 + $0x60] sm:$0xff] %v835
        %934 = vst [vmem:[%s327 + $0x68] sm:$0xff] %v836
        %935 = vst [vmem:[%s327 + $0x70] sm:$0xff] %v837
        %936 = vst [vmem:[%s327 + $0x78] sm:$0xff] %v838
        %v937 = vld [vmem:[%s267] sm:$0xff]
        %v938 = vld [vmem:[%s267 + $0x8] sm:$0xff]
        %v939 = vld [vmem:[%s267 + $0x10] sm:$0xff]
        %v940 = vld [vmem:[%s267 + $0x18] sm:$0xff]
        %v941 = vld [vmem:[%s267 + $0x20] sm:$0xff]
        %v942 = vld [vmem:[%s267 + $0x28] sm:$0xff]
        %v943 = vld [vmem:[%s267 + $0x30] sm:$0xff]
        %v944 = vld [vmem:[%s267 + $0x38] sm:$0xff]
        %v945 = vmul.f32 %v937, 0.125
        %v946 = vmul.f32 %v938, 0.125
        %v947 = vmul.f32 %v939, 0.125
        %v948 = vmul.f32 %v940, 0.125
        %v949 = vmul.f32 %v941, 0.125
        %v950 = vmul.f32 %v942, 0.125
        %v951 = vmul.f32 %v943, 0.125
        %v952 = vmul.f32 %v944, 0.125
        %v953 = vld [vmem:[%s277] sm:$0xff]
        %v954 = vld [vmem:[%s277 + $0x8] sm:$0xff]
        %v955 = vld [vmem:[%s277 + $0x10] sm:$0xff]
        %v956 = vld [vmem:[%s277 + $0x18] sm:$0xff]
        %v957 = vld [vmem:[%s277 + $0x20] sm:$0xff]
        %v958 = vld [vmem:[%s277 + $0x28] sm:$0xff]
        %v959 = vld [vmem:[%s277 + $0x30] sm:$0xff]
        %v960 = vld [vmem:[%s277 + $0x38] sm:$0xff]
        %v961 = vld [vmem:[%s277 + $0x40] sm:$0xff]
        %v962 = vld [vmem:[%s277 + $0x48] sm:$0xff]
        %v963 = vld [vmem:[%s277 + $0x50] sm:$0xff]
        %v964 = vld [vmem:[%s277 + $0x58] sm:$0xff]
        %v965 = vld [vmem:[%s277 + $0x60] sm:$0xff]
        %v966 = vld [vmem:[%s277 + $0x68] sm:$0xff]
        %v967 = vld [vmem:[%s277 + $0x70] sm:$0xff]
        %v968 = vld [vmem:[%s277 + $0x78] sm:$0xff]
        %v969 = vld [vmem:[%s277 + $0x80] sm:$0xff]
        %v970 = vld [vmem:[%s277 + $0x88] sm:$0xff]
        %v971 = vld [vmem:[%s277 + $0x90] sm:$0xff]
        %v972 = vld [vmem:[%s277 + $0x98] sm:$0xff]
        %v973 = vld [vmem:[%s277 + $0xa0] sm:$0xff]
        %v974 = vld [vmem:[%s277 + $0xa8] sm:$0xff]
        %v975 = vld [vmem:[%s277 + $0xb0] sm:$0xff]
        %v976 = vld [vmem:[%s277 + $0xb8] sm:$0xff]
        %v977 = vld [vmem:[%s277 + $0xc0] sm:$0xff]
        %v978 = vld [vmem:[%s277 + $0xc8] sm:$0xff]
        %v979 = vld [vmem:[%s277 + $0xd0] sm:$0xff]
        %v980 = vld [vmem:[%s277 + $0xd8] sm:$0xff]
        %v981 = vld [vmem:[%s277 + $0xe0] sm:$0xff]
        %v982 = vld [vmem:[%s277 + $0xe8] sm:$0xff]
        %v983 = vld [vmem:[%s277 + $0xf0] sm:$0xff]
        %v984 = vld [vmem:[%s277 + $0xf8] sm:$0xff]
        %v985 = vld [vmem:[%s287] sm:$0xff]
        %v986 = vld [vmem:[%s287 + $0x8] sm:$0xff]
        %v987 = vld [vmem:[%s287 + $0x10] sm:$0xff]
        %v988 = vld [vmem:[%s287 + $0x18] sm:$0xff]
        %v989 = vld [vmem:[%s287 + $0x20] sm:$0xff]
        %v990 = vld [vmem:[%s287 + $0x28] sm:$0xff]
        %v991 = vld [vmem:[%s287 + $0x30] sm:$0xff]
        %v992 = vld [vmem:[%s287 + $0x38] sm:$0xff]
        %v993 = vld [vmem:[%s287 + $0x40] sm:$0xff]
        %v994 = vld [vmem:[%s287 + $0x48] sm:$0xff]
        %v995 = vld [vmem:[%s287 + $0x50] sm:$0xff]
        %v996 = vld [vmem:[%s287 + $0x58] sm:$0xff]
        %v997 = vld [vmem:[%s287 + $0x60] sm:$0xff]
        %v998 = vld [vmem:[%s287 + $0x68] sm:$0xff]
        %v999 = vld [vmem:[%s287 + $0x70] sm:$0xff]
        %v1000 = vld [vmem:[%s287 + $0x78] sm:$0xff]
        %v1001 = vld [vmem:[%s287 + $0x80] sm:$0xff]
        %v1002 = vld [vmem:[%s287 + $0x88] sm:$0xff]
        %v1003 = vld [vmem:[%s287 + $0x90] sm:$0xff]
        %v1004 = vld [vmem:[%s287 + $0x98] sm:$0xff]
        %v1005 = vld [vmem:[%s287 + $0xa0] sm:$0xff]
        %v1006 = vld [vmem:[%s287 + $0xa8] sm:$0xff]
        %v1007 = vld [vmem:[%s287 + $0xb0] sm:$0xff]
        %v1008 = vld [vmem:[%s287 + $0xb8] sm:$0xff]
        %v1009 = vld [vmem:[%s287 + $0xc0] sm:$0xff]
        %v1010 = vld [vmem:[%s287 + $0xc8] sm:$0xff]
        %v1011 = vld [vmem:[%s287 + $0xd0] sm:$0xff]
        %v1012 = vld [vmem:[%s287 + $0xd8] sm:$0xff]
        %v1013 = vld [vmem:[%s287 + $0xe0] sm:$0xff]
        %v1014 = vld [vmem:[%s287 + $0xe8] sm:$0xff]
        %v1015 = vld [vmem:[%s287 + $0xf0] sm:$0xff]
        %v1016 = vld [vmem:[%s287 + $0xf8] sm:$0xff]
        %1025 = vrot.lane.b32.xlu0 %v945, 64
        %v1026 = vpop.permute.xlu0 %1025
        %1027 = vrot.lane.b32.xlu0 %v946, 64
        %v1028 = vpop.permute.xlu0 %1027
        %1029 = vrot.lane.b32.xlu0 %v947, 64
        %v1030 = vpop.permute.xlu0 %1029
        %1031 = vrot.lane.b32.xlu0 %v948, 64
        %v1032 = vpop.permute.xlu0 %1031
        %1033 = vrot.lane.b32.xlu0 %v949, 64
        %v1034 = vpop.permute.xlu0 %1033
        %1035 = vrot.lane.b32.xlu0 %v950, 64
        %v1036 = vpop.permute.xlu0 %1035
        %1037 = vrot.lane.b32.xlu0 %v951, 64
        %v1038 = vpop.permute.xlu0 %1037
        %1039 = vrot.lane.b32.xlu0 %v952, 64
        %v1040 = vpop.permute.xlu0 %1039
        %1073 = vrot.lane.b32.xlu0 %v953, 64
        %v1074 = vpop.permute.xlu0 %1073
        %1075 = vrot.lane.b32.xlu0 %v954, 64
        %v1076 = vpop.permute.xlu0 %1075
        %1077 = vrot.lane.b32.xlu0 %v955, 64
        %v1078 = vpop.permute.xlu0 %1077
        %1079 = vrot.lane.b32.xlu0 %v956, 64
        %v1080 = vpop.permute.xlu0 %1079
        %1081 = vrot.lane.b32.xlu0 %v957, 64
        %v1082 = vpop.permute.xlu0 %1081
        %1083 = vrot.lane.b32.xlu0 %v958, 64
        %v1084 = vpop.permute.xlu0 %1083
        %1085 = vrot.lane.b32.xlu0 %v959, 64
        %v1086 = vpop.permute.xlu0 %1085
        %1087 = vrot.lane.b32.xlu0 %v960, 64
        %v1088 = vpop.permute.xlu0 %1087
        %1089 = vrot.lane.b32.xlu0 %v961, 64
        %v1090 = vpop.permute.xlu0 %1089
        %1091 = vrot.lane.b32.xlu0 %v962, 64
        %v1092 = vpop.permute.xlu0 %1091
        %1093 = vrot.lane.b32.xlu0 %v963, 64
        %v1094 = vpop.permute.xlu0 %1093
        %1095 = vrot.lane.b32.xlu0 %v964, 64
        %v1096 = vpop.permute.xlu0 %1095
        %1097 = vrot.lane.b32.xlu0 %v965, 64
        %v1098 = vpop.permute.xlu0 %1097
        %1099 = vrot.lane.b32.xlu0 %v966, 64
        %v1100 = vpop.permute.xlu0 %1099
        %1101 = vrot.lane.b32.xlu0 %v967, 64
        %v1102 = vpop.permute.xlu0 %1101
        %1103 = vrot.lane.b32.xlu0 %v968, 64
        %v1104 = vpop.permute.xlu0 %1103
        %1105 = vrot.lane.b32.xlu0 %v969, 64
        %v1106 = vpop.permute.xlu0 %1105
        %1107 = vrot.lane.b32.xlu0 %v970, 64
        %v1108 = vpop.permute.xlu0 %1107
        %1109 = vrot.lane.b32.xlu0 %v971, 64
        %v1110 = vpop.permute.xlu0 %1109
        %1111 = vrot.lane.b32.xlu0 %v972, 64
        %v1112 = vpop.permute.xlu0 %1111
        %1113 = vrot.lane.b32.xlu0 %v973, 64
        %v1114 = vpop.permute.xlu0 %1113
        %1115 = vrot.lane.b32.xlu0 %v974, 64
        %v1116 = vpop.permute.xlu0 %1115
        %1117 = vrot.lane.b32.xlu0 %v975, 64
        %v1118 = vpop.permute.xlu0 %1117
        %1119 = vrot.lane.b32.xlu0 %v976, 64
        %v1120 = vpop.permute.xlu0 %1119
        %1121 = vrot.lane.b32.xlu0 %v977, 64
        %v1122 = vpop.permute.xlu0 %1121
        %1123 = vrot.lane.b32.xlu0 %v978, 64
        %v1124 = vpop.permute.xlu0 %1123
        %1125 = vrot.lane.b32.xlu0 %v979, 64
        %v1126 = vpop.permute.xlu0 %1125
        %1127 = vrot.lane.b32.xlu0 %v980, 64
        %v1128 = vpop.permute.xlu0 %1127
        %1129 = vrot.lane.b32.xlu0 %v981, 64
        %v1130 = vpop.permute.xlu0 %1129
        %1131 = vrot.lane.b32.xlu0 %v982, 64
        %v1132 = vpop.permute.xlu0 %1131
        %1133 = vrot.lane.b32.xlu0 %v983, 64
        %v1134 = vpop.permute.xlu0 %1133
        %1135 = vrot.lane.b32.xlu0 %v984, 64
        %v1136 = vpop.permute.xlu0 %1135
        %v1137 = vsel %vm412, %v1026, 0
        %v1139 = vsel %vm412, %v1028, 0
        %v1141 = vsel %vm412, %v1030, 0
        %v1143 = vsel %vm412, %v1032, 0
        %v1145 = vsel %vm412, %v1034, 0
        %v1147 = vsel %vm412, %v1036, 0
        %v1149 = vsel %vm412, %v1038, 0
        %v1151 = vsel %vm412, %v1040, 0
        %v1153 = vsel %vm412, %v1074, 0
        %v1155 = vsel %vm412, %v1076, 0
        %v1157 = vsel %vm412, %v1078, 0
        %v1159 = vsel %vm412, %v1080, 0
        %v1161 = vsel %vm412, %v1082, 0
        %v1163 = vsel %vm412, %v1084, 0
        %v1165 = vsel %vm412, %v1086, 0
        %v1167 = vsel %vm412, %v1088, 0
        %v1169 = vsel %vm412, %v1090, 0
        %v1171 = vsel %vm412, %v1092, 0
        %v1173 = vsel %vm412, %v1094, 0
        %v1175 = vsel %vm412, %v1096, 0
        %v1177 = vsel %vm412, %v1098, 0
        %v1179 = vsel %vm412, %v1100, 0
        %v1181 = vsel %vm412, %v1102, 0
        %v1183 = vsel %vm412, %v1104, 0
        %v1185 = vsel %vm412, %v1106, 0
        %v1187 = vsel %vm412, %v1108, 0
        %v1189 = vsel %vm412, %v1110, 0
        %v1191 = vsel %vm412, %v1112, 0
        %v1193 = vsel %vm412, %v1114, 0
        %v1195 = vsel %vm412, %v1116, 0
        %v1197 = vsel %vm412, %v1118, 0
        %v1199 = vsel %vm412, %v1120, 0
        %v1201 = vsel %vm412, %v1122, 0
        %v1203 = vsel %vm412, %v1124, 0
        %v1205 = vsel %vm412, %v1126, 0
        %v1207 = vsel %vm412, %v1128, 0
        %v1209 = vsel %vm412, %v1130, 0
        %v1211 = vsel %vm412, %v1132, 0
        %v1213 = vsel %vm412, %v1134, 0
        %v1215 = vsel %vm412, %v1136, 0
        %1217 = vmatpush.xpose.msra.mxu0 %v1183
        %1218 = vmatpush.xpose.msra.mxu0 %v1181
        %1219 = vmatpush.xpose.msra.mxu0 %v1179
        %1220 = vmatpush.xpose.msra.mxu0 %v1177
        %1221 = vmatpush.xpose.msra.mxu0 %v1175
        %1222 = vmatpush.xpose.msra.mxu0 %v1173
        %1223 = vmatpush.xpose.msra.mxu0 %v1171
        %1224 = vmatpush.xpose.msra.mxu0 %v1169
        %1225 = vmatpush.xpose.msra.mxu0 %v1167
        %1226 = vmatpush.xpose.msra.mxu0 %v1165
        %1227 = vmatpush.xpose.msra.mxu0 %v1163
        %1228 = vmatpush.xpose.msra.mxu0 %v1161
        %1229 = vmatpush.xpose.msra.mxu0 %v1159
        %1230 = vmatpush.xpose.msra.mxu0 %v1157
        %1231 = vmatpush.xpose.msra.mxu0 %v1155
        %1232 = vmatpush.xpose.msra.mxu0 %v1153
        %1233 = vmatmul.f32.gmra.mxu0 %v1137
        %v1234 = vpop.f32.mrf.mxu0
        %v1235 = vadd.f32 0.0, %v1234
        %1236 = vmatmul.f32.gmra.mxu0 %v1139
        %v1237 = vpop.f32.mrf.mxu0
        %v1238 = vadd.f32 0.0, %v1237
        %1239 = vmatmul.f32.gmra.mxu0 %v1141
        %v1240 = vpop.f32.mrf.mxu0
        %v1241 = vadd.f32 0.0, %v1240
        %1242 = vmatmul.f32.gmra.mxu0 %v1143
        %v1243 = vpop.f32.mrf.mxu0
        %v1244 = vadd.f32 0.0, %v1243
        %1245 = vmatmul.f32.gmra.mxu0 %v1145
        %v1246 = vpop.f32.mrf.mxu0
        %v1247 = vadd.f32 0.0, %v1246
        %1248 = vmatmul.f32.gmra.mxu0 %v1147
        %v1249 = vpop.f32.mrf.mxu0
        %v1250 = vadd.f32 0.0, %v1249
        %1251 = vmatmul.f32.gmra.mxu0 %v1149
        %v1252 = vpop.f32.mrf.mxu0
        %v1253 = vadd.f32 0.0, %v1252
        %1254 = vmatmul.f32.gmra.mxu0 %v1151
        %v1255 = vpop.f32.mrf.mxu0
        %v1256 = vadd.f32 0.0, %v1255
        %1257 = vdwg.mxu0
        %1258 = vmatpush.xpose.msra.mxu0 %v1215
        %1259 = vmatpush.xpose.msra.mxu0 %v1213
        %1260 = vmatpush.xpose.msra.mxu0 %v1211
        %1261 = vmatpush.xpose.msra.mxu0 %v1209
        %1262 = vmatpush.xpose.msra.mxu0 %v1207
        %1263 = vmatpush.xpose.msra.mxu0 %v1205
        %1264 = vmatpush.xpose.msra.mxu0 %v1203
        %1265 = vmatpush.xpose.msra.mxu0 %v1201
        %1266 = vmatpush.xpose.msra.mxu0 %v1199
        %1267 = vmatpush.xpose.msra.mxu0 %v1197
        %1268 = vmatpush.xpose.msra.mxu0 %v1195
        %1269 = vmatpush.xpose.msra.mxu0 %v1193
        %1270 = vmatpush.xpose.msra.mxu0 %v1191
        %1271 = vmatpush.xpose.msra.mxu0 %v1189
        %1272 = vmatpush.xpose.msra.mxu0 %v1187
        %1273 = vmatpush.xpose.msra.mxu0 %v1185
        %1274 = vmatmul.f32.gmra.mxu0 %v1137
        %v1275 = vpop.f32.mrf.mxu0
        %v1276 = vadd.f32 0.0, %v1275
        %1277 = vmatmul.f32.gmra.mxu0 %v1139
        %v1278 = vpop.f32.mrf.mxu0
        %v1279 = vadd.f32 0.0, %v1278
        %1280 = vmatmul.f32.gmra.mxu0 %v1141
        %v1281 = vpop.f32.mrf.mxu0
        %v1282 = vadd.f32 0.0, %v1281
        %1283 = vmatmul.f32.gmra.mxu0 %v1143
        %v1284 = vpop.f32.mrf.mxu0
        %v1285 = vadd.f32 0.0, %v1284
        %1286 = vmatmul.f32.gmra.mxu0 %v1145
        %v1287 = vpop.f32.mrf.mxu0
        %v1288 = vadd.f32 0.0, %v1287
        %1289 = vmatmul.f32.gmra.mxu0 %v1147
        %v1290 = vpop.f32.mrf.mxu0
        %v1291 = vadd.f32 0.0, %v1290
        %1292 = vmatmul.f32.gmra.mxu0 %v1149
        %v1293 = vpop.f32.mrf.mxu0
        %v1294 = vadd.f32 0.0, %v1293
        %1295 = vmatmul.f32.gmra.mxu0 %v1151
        %v1296 = vpop.f32.mrf.mxu0
        %v1297 = vadd.f32 0.0, %v1296
        %1298 = vdwg.mxu0
        %v1299 = vmax.f32 %v1235, %v1276
        %1300 = vmax.xlane.f32.xlu0 %v1299
        %v1301 = vpop.xlane.xlu0 %1300
        %v1302 = vmax.f32 %v1238, %v1279
        %1303 = vmax.xlane.f32.xlu0 %v1302
        %v1304 = vpop.xlane.xlu0 %1303
        %v1305 = vmax.f32 %v1241, %v1282
        %1306 = vmax.xlane.f32.xlu0 %v1305
        %v1307 = vpop.xlane.xlu0 %1306
        %v1308 = vmax.f32 %v1244, %v1285
        %1309 = vmax.xlane.f32.xlu0 %v1308
        %v1310 = vpop.xlane.xlu0 %1309
        %v1311 = vmax.f32 %v1247, %v1288
        %1312 = vmax.xlane.f32.xlu0 %v1311
        %v1313 = vpop.xlane.xlu0 %1312
        %v1314 = vmax.f32 %v1250, %v1291
        %1315 = vmax.xlane.f32.xlu0 %v1314
        %v1316 = vpop.xlane.xlu0 %1315
        %v1317 = vmax.f32 %v1253, %v1294
        %1318 = vmax.xlane.f32.xlu0 %v1317
        %v1319 = vpop.xlane.xlu0 %1318
        %v1320 = vmax.f32 %v1256, %v1297
        %1321 = vmax.xlane.f32.xlu0 %v1320
        %v1322 = vpop.xlane.xlu0 %1321
        %v1323 = vsub.f32 %v1235, %v1301
        %v1324 = vsub.f32 %v1276, %v1301
        %v1325 = vsub.f32 %v1238, %v1304
        %v1326 = vsub.f32 %v1279, %v1304
        %v1327 = vsub.f32 %v1241, %v1307
        %v1328 = vsub.f32 %v1282, %v1307
        %v1329 = vsub.f32 %v1244, %v1310
        %v1330 = vsub.f32 %v1285, %v1310
        %v1331 = vsub.f32 %v1247, %v1313
        %v1332 = vsub.f32 %v1288, %v1313
        %v1333 = vsub.f32 %v1250, %v1316
        %v1334 = vsub.f32 %v1291, %v1316
        %v1335 = vsub.f32 %v1253, %v1319
        %v1336 = vsub.f32 %v1294, %v1319
        %v1337 = vsub.f32 %v1256, %v1322
        %v1338 = vsub.f32 %v1297, %v1322
        %v1339 = vmul.f32 %v1323, 1.442695
        %v1340 = vpow.pop %v1339
        %v1341 = vmul.f32 %v1324, 1.442695
        %v1342 = vpow.pop %v1341
        %v1343 = vmul.f32 %v1325, 1.442695
        %v1344 = vpow.pop %v1343
        %v1345 = vmul.f32 %v1326, 1.442695
        %v1346 = vpow.pop %v1345
        %v1347 = vmul.f32 %v1327, 1.442695
        %v1348 = vpow.pop %v1347
        %v1349 = vmul.f32 %v1328, 1.442695
        %v1350 = vpow.pop %v1349
        %v1351 = vmul.f32 %v1329, 1.442695
        %v1352 = vpow.pop %v1351
        %v1353 = vmul.f32 %v1330, 1.442695
        %v1354 = vpow.pop %v1353
        %v1355 = vmul.f32 %v1331, 1.442695
        %v1356 = vpow.pop %v1355
        %v1357 = vmul.f32 %v1332, 1.442695
        %v1358 = vpow.pop %v1357
        %v1359 = vmul.f32 %v1333, 1.442695
        %v1360 = vpow.pop %v1359
        %v1361 = vmul.f32 %v1334, 1.442695
        %v1362 = vpow.pop %v1361
        %v1363 = vmul.f32 %v1335, 1.442695
        %v1364 = vpow.pop %v1363
        %v1365 = vmul.f32 %v1336, 1.442695
        %v1366 = vpow.pop %v1365
        %v1367 = vmul.f32 %v1337, 1.442695
        %v1368 = vpow.pop %v1367
        %v1369 = vmul.f32 %v1338, 1.442695
        %v1370 = vpow.pop %v1369
        %v1371 = vadd.f32 %v1340, %v1342
        %1372 = vadd.xlane.f32.xlu0 %v1371
        %v1373 = vpop.xlane.xlu0 %1372
        %v1374 = vadd.f32 %v1344, %v1346
        %1375 = vadd.xlane.f32.xlu0 %v1374
        %v1376 = vpop.xlane.xlu0 %1375
        %v1377 = vadd.f32 %v1348, %v1350
        %1378 = vadd.xlane.f32.xlu0 %v1377
        %v1379 = vpop.xlane.xlu0 %1378
        %v1380 = vadd.f32 %v1352, %v1354
        %1381 = vadd.xlane.f32.xlu0 %v1380
        %v1382 = vpop.xlane.xlu0 %1381
        %v1383 = vadd.f32 %v1356, %v1358
        %1384 = vadd.xlane.f32.xlu0 %v1383
        %v1385 = vpop.xlane.xlu0 %1384
        %v1386 = vadd.f32 %v1360, %v1362
        %1387 = vadd.xlane.f32.xlu0 %v1386
        %v1388 = vpop.xlane.xlu0 %1387
        %v1389 = vadd.f32 %v1364, %v1366
        %1390 = vadd.xlane.f32.xlu0 %v1389
        %v1391 = vpop.xlane.xlu0 %1390
        %v1392 = vadd.f32 %v1368, %v1370
        %1393 = vadd.xlane.f32.xlu0 %v1392
        %v1394 = vpop.xlane.xlu0 %1393
        %v1395 = vrcp.pop %v1373
        %v1396 = vmul.f32 %v1373, %v1395
        %v1397 = vsub.f32 1.0, %v1396
        %v1398 = vmul.f32 %v1395, %v1397
        %v1399 = vadd.f32 %v1395, %v1398
        %vm1400 = vweird.f32 %v1373
        %vm1401 = vweird.f32 %v1395
        %vm1402 = vmor %vm1400, %vm1401
        %v1403 = vsel %vm1402, %v1395, %v1399
        %v1404 = vand.u32 2147483647, %v1373
        %vm1405 = vcmp.eq.f32.partialorder %v1404, 8.507059e+37
        %v1406 = vand.u32 %v1373, 2147483648
        %v1407 = vor.u32 1.1754944e-38, %v1406
        %v1408 = vsel %vm1405, %v1407, %v1403
        %v1409 = vrcp.pop %v1376
        %v1410 = vmul.f32 %v1376, %v1409
        %v1411 = vsub.f32 1.0, %v1410
        %v1412 = vmul.f32 %v1409, %v1411
        %v1413 = vadd.f32 %v1409, %v1412
        %vm1414 = vweird.f32 %v1376
        %vm1415 = vweird.f32 %v1409
        %vm1416 = vmor %vm1414, %vm1415
        %v1417 = vsel %vm1416, %v1409, %v1413
        %v1418 = vand.u32 2147483647, %v1376
        %vm1419 = vcmp.eq.f32.partialorder %v1418, 8.507059e+37
        %v1420 = vand.u32 %v1376, 2147483648
        %v1421 = vor.u32 1.1754944e-38, %v1420
        %v1422 = vsel %vm1419, %v1421, %v1417
        %v1423 = vrcp.pop %v1379
        %v1424 = vmul.f32 %v1379, %v1423
        %v1425 = vsub.f32 1.0, %v1424
        %v1426 = vmul.f32 %v1423, %v1425
        %v1427 = vadd.f32 %v1423, %v1426
        %vm1428 = vweird.f32 %v1379
        %vm1429 = vweird.f32 %v1423
        %vm1430 = vmor %vm1428, %vm1429
        %v1431 = vsel %vm1430, %v1423, %v1427
        %v1432 = vand.u32 2147483647, %v1379
        %vm1433 = vcmp.eq.f32.partialorder %v1432, 8.507059e+37
        %v1434 = vand.u32 %v1379, 2147483648
        %v1435 = vor.u32 1.1754944e-38, %v1434
        %v1436 = vsel %vm1433, %v1435, %v1431
        %v1437 = vrcp.pop %v1382
        %v1438 = vmul.f32 %v1382, %v1437
        %v1439 = vsub.f32 1.0, %v1438
        %v1440 = vmul.f32 %v1437, %v1439
        %v1441 = vadd.f32 %v1437, %v1440
        %vm1442 = vweird.f32 %v1382
        %vm1443 = vweird.f32 %v1437
        %vm1444 = vmor %vm1442, %vm1443
        %v1445 = vsel %vm1444, %v1437, %v1441
        %v1446 = vand.u32 2147483647, %v1382
        %vm1447 = vcmp.eq.f32.partialorder %v1446, 8.507059e+37
        %v1448 = vand.u32 %v1382, 2147483648
        %v1449 = vor.u32 1.1754944e-38, %v1448
        %v1450 = vsel %vm1447, %v1449, %v1445
        %v1451 = vrcp.pop %v1385
        %v1452 = vmul.f32 %v1385, %v1451
        %v1453 = vsub.f32 1.0, %v1452
        %v1454 = vmul.f32 %v1451, %v1453
        %v1455 = vadd.f32 %v1451, %v1454
        %vm1456 = vweird.f32 %v1385
        %vm1457 = vweird.f32 %v1451
        %vm1458 = vmor %vm1456, %vm1457
        %v1459 = vsel %vm1458, %v1451, %v1455
        %v1460 = vand.u32 2147483647, %v1385
        %vm1461 = vcmp.eq.f32.partialorder %v1460, 8.507059e+37
        %v1462 = vand.u32 %v1385, 2147483648
        %v1463 = vor.u32 1.1754944e-38, %v1462
        %v1464 = vsel %vm1461, %v1463, %v1459
        %v1465 = vrcp.pop %v1388
        %v1466 = vmul.f32 %v1388, %v1465
        %v1467 = vsub.f32 1.0, %v1466
        %v1468 = vmul.f32 %v1465, %v1467
        %v1469 = vadd.f32 %v1465, %v1468
        %vm1470 = vweird.f32 %v1388
        %vm1471 = vweird.f32 %v1465
        %vm1472 = vmor %vm1470, %vm1471
        %v1473 = vsel %vm1472, %v1465, %v1469
        %v1474 = vand.u32 2147483647, %v1388
        %vm1475 = vcmp.eq.f32.partialorder %v1474, 8.507059e+37
        %v1476 = vand.u32 %v1388, 2147483648
        %v1477 = vor.u32 1.1754944e-38, %v1476
        %v1478 = vsel %vm1475, %v1477, %v1473
        %v1479 = vrcp.pop %v1391
        %v1480 = vmul.f32 %v1391, %v1479
        %v1481 = vsub.f32 1.0, %v1480
        %v1482 = vmul.f32 %v1479, %v1481
        %v1483 = vadd.f32 %v1479, %v1482
        %vm1484 = vweird.f32 %v1391
        %vm1485 = vweird.f32 %v1479
        %vm1486 = vmor %vm1484, %vm1485
        %v1487 = vsel %vm1486, %v1479, %v1483
        %v1488 = vand.u32 2147483647, %v1391
        %vm1489 = vcmp.eq.f32.partialorder %v1488, 8.507059e+37
        %v1490 = vand.u32 %v1391, 2147483648
        %v1491 = vor.u32 1.1754944e-38, %v1490
        %v1492 = vsel %vm1489, %v1491, %v1487
        %v1493 = vrcp.pop %v1394
        %v1494 = vmul.f32 %v1394, %v1493
        %v1495 = vsub.f32 1.0, %v1494
        %v1496 = vmul.f32 %v1493, %v1495
        %v1497 = vadd.f32 %v1493, %v1496
        %vm1498 = vweird.f32 %v1394
        %vm1499 = vweird.f32 %v1493
        %vm1500 = vmor %vm1498, %vm1499
        %v1501 = vsel %vm1500, %v1493, %v1497
        %v1502 = vand.u32 2147483647, %v1394
        %vm1503 = vcmp.eq.f32.partialorder %v1502, 8.507059e+37
        %v1504 = vand.u32 %v1394, 2147483648
        %v1505 = vor.u32 1.1754944e-38, %v1504
        %v1506 = vsel %vm1503, %v1505, %v1501
        %v1507 = vmul.f32 %v1340, %v1408
        %v1508 = vmul.f32 %v1342, %v1408
        %v1509 = vmul.f32 %v1344, %v1422
        %v1510 = vmul.f32 %v1346, %v1422
        %v1511 = vmul.f32 %v1348, %v1436
        %v1512 = vmul.f32 %v1350, %v1436
        %v1513 = vmul.f32 %v1352, %v1450
        %v1514 = vmul.f32 %v1354, %v1450
        %v1515 = vmul.f32 %v1356, %v1464
        %v1516 = vmul.f32 %v1358, %v1464
        %v1517 = vmul.f32 %v1360, %v1478
        %v1518 = vmul.f32 %v1362, %v1478
        %v1519 = vmul.f32 %v1364, %v1492
        %v1520 = vmul.f32 %v1366, %v1492
        %v1521 = vmul.f32 %v1368, %v1506
        %v1522 = vmul.f32 %v1370, %v1506
        %1555 = vrot.lane.b32.xlu0 %v985, 64
        %v1556 = vpop.permute.xlu0 %1555
        %1557 = vrot.lane.b32.xlu0 %v986, 64
        %v1558 = vpop.permute.xlu0 %1557
        %1559 = vrot.lane.b32.xlu0 %v987, 64
        %v1560 = vpop.permute.xlu0 %1559
        %1561 = vrot.lane.b32.xlu0 %v988, 64
        %v1562 = vpop.permute.xlu0 %1561
        %1563 = vrot.lane.b32.xlu0 %v989, 64
        %v1564 = vpop.permute.xlu0 %1563
        %1565 = vrot.lane.b32.xlu0 %v990, 64
        %v1566 = vpop.permute.xlu0 %1565
        %1567 = vrot.lane.b32.xlu0 %v991, 64
        %v1568 = vpop.permute.xlu0 %1567
        %1569 = vrot.lane.b32.xlu0 %v992, 64
        %v1570 = vpop.permute.xlu0 %1569
        %1571 = vrot.lane.b32.xlu0 %v993, 64
        %v1572 = vpop.permute.xlu0 %1571
        %1573 = vrot.lane.b32.xlu0 %v994, 64
        %v1574 = vpop.permute.xlu0 %1573
        %1575 = vrot.lane.b32.xlu0 %v995, 64
        %v1576 = vpop.permute.xlu0 %1575
        %1577 = vrot.lane.b32.xlu0 %v996, 64
        %v1578 = vpop.permute.xlu0 %1577
        %1579 = vrot.lane.b32.xlu0 %v997, 64
        %v1580 = vpop.permute.xlu0 %1579
        %1581 = vrot.lane.b32.xlu0 %v998, 64
        %v1582 = vpop.permute.xlu0 %1581
        %1583 = vrot.lane.b32.xlu0 %v999, 64
        %v1584 = vpop.permute.xlu0 %1583
        %1585 = vrot.lane.b32.xlu0 %v1000, 64
        %v1586 = vpop.permute.xlu0 %1585
        %1587 = vrot.lane.b32.xlu0 %v1001, 64
        %v1588 = vpop.permute.xlu0 %1587
        %1589 = vrot.lane.b32.xlu0 %v1002, 64
        %v1590 = vpop.permute.xlu0 %1589
        %1591 = vrot.lane.b32.xlu0 %v1003, 64
        %v1592 = vpop.permute.xlu0 %1591
        %1593 = vrot.lane.b32.xlu0 %v1004, 64
        %v1594 = vpop.permute.xlu0 %1593
        %1595 = vrot.lane.b32.xlu0 %v1005, 64
        %v1596 = vpop.permute.xlu0 %1595
        %1597 = vrot.lane.b32.xlu0 %v1006, 64
        %v1598 = vpop.permute.xlu0 %1597
        %1599 = vrot.lane.b32.xlu0 %v1007, 64
        %v1600 = vpop.permute.xlu0 %1599
        %1601 = vrot.lane.b32.xlu0 %v1008, 64
        %v1602 = vpop.permute.xlu0 %1601
        %1603 = vrot.lane.b32.xlu0 %v1009, 64
        %v1604 = vpop.permute.xlu0 %1603
        %1605 = vrot.lane.b32.xlu0 %v1010, 64
        %v1606 = vpop.permute.xlu0 %1605
        %1607 = vrot.lane.b32.xlu0 %v1011, 64
        %v1608 = vpop.permute.xlu0 %1607
        %1609 = vrot.lane.b32.xlu0 %v1012, 64
        %v1610 = vpop.permute.xlu0 %1609
        %1611 = vrot.lane.b32.xlu0 %v1013, 64
        %v1612 = vpop.permute.xlu0 %1611
        %1613 = vrot.lane.b32.xlu0 %v1014, 64
        %v1614 = vpop.permute.xlu0 %1613
        %1615 = vrot.lane.b32.xlu0 %v1015, 64
        %v1616 = vpop.permute.xlu0 %1615
        %1617 = vrot.lane.b32.xlu0 %v1016, 64
        %v1618 = vpop.permute.xlu0 %1617
        %1651 = vmatpush.msra.mxu0 %v1586
        %1652 = vmatpush.msra.mxu0 %v1584
        %1653 = vmatpush.msra.mxu0 %v1582
        %1654 = vmatpush.msra.mxu0 %v1580
        %1655 = vmatpush.msra.mxu0 %v1578
        %1656 = vmatpush.msra.mxu0 %v1576
        %1657 = vmatpush.msra.mxu0 %v1574
        %1658 = vmatpush.msra.mxu0 %v1572
        %1659 = vmatpush.msra.mxu0 %v1570
        %1660 = vmatpush.msra.mxu0 %v1568
        %1661 = vmatpush.msra.mxu0 %v1566
        %1662 = vmatpush.msra.mxu0 %v1564
        %1663 = vmatpush.msra.mxu0 %v1562
        %1664 = vmatpush.msra.mxu0 %v1560
        %1665 = vmatpush.msra.mxu0 %v1558
        %1666 = vmatpush.msra.mxu0 %v1556
        %1667 = vmatmul.f32.gmra.mxu0 %v1507
        %v1668 = vpop.f32.mrf.mxu0
        %v1669 = vadd.f32 0.0, %v1668
        %1670 = vmatmul.f32.gmra.mxu0 %v1509
        %v1671 = vpop.f32.mrf.mxu0
        %v1672 = vadd.f32 0.0, %v1671
        %1673 = vmatmul.f32.gmra.mxu0 %v1511
        %v1674 = vpop.f32.mrf.mxu0
        %v1675 = vadd.f32 0.0, %v1674
        %1676 = vmatmul.f32.gmra.mxu0 %v1513
        %v1677 = vpop.f32.mrf.mxu0
        %v1678 = vadd.f32 0.0, %v1677
        %1679 = vmatmul.f32.gmra.mxu0 %v1515
        %v1680 = vpop.f32.mrf.mxu0
        %v1681 = vadd.f32 0.0, %v1680
        %1682 = vmatmul.f32.gmra.mxu0 %v1517
        %v1683 = vpop.f32.mrf.mxu0
        %v1684 = vadd.f32 0.0, %v1683
        %1685 = vmatmul.f32.gmra.mxu0 %v1519
        %v1686 = vpop.f32.mrf.mxu0
        %v1687 = vadd.f32 0.0, %v1686
        %1688 = vmatmul.f32.gmra.mxu0 %v1521
        %v1689 = vpop.f32.mrf.mxu0
        %v1690 = vadd.f32 0.0, %v1689
        %1691 = vdwg.mxu0
        %1692 = vmatpush.msra.mxu0 %v1618
        %1693 = vmatpush.msra.mxu0 %v1616
        %1694 = vmatpush.msra.mxu0 %v1614
        %1695 = vmatpush.msra.mxu0 %v1612
        %1696 = vmatpush.msra.mxu0 %v1610
        %1697 = vmatpush.msra.mxu0 %v1608
        %1698 = vmatpush.msra.mxu0 %v1606
        %1699 = vmatpush.msra.mxu0 %v1604
        %1700 = vmatpush.msra.mxu0 %v1602
        %1701 = vmatpush.msra.mxu0 %v1600
        %1702 = vmatpush.msra.mxu0 %v1598
        %1703 = vmatpush.msra.mxu0 %v1596
        %1704 = vmatpush.msra.mxu0 %v1594
        %1705 = vmatpush.msra.mxu0 %v1592
        %1706 = vmatpush.msra.mxu0 %v1590
        %1707 = vmatpush.msra.mxu0 %v1588
        %1708 = vmatmul.f32.gmra.mxu0 %v1508
        %v1709 = vpop.f32.mrf.mxu0
        %v1710 = vadd.f32 %v1669, %v1709
        %1711 = vmatmul.f32.gmra.mxu0 %v1510
        %v1712 = vpop.f32.mrf.mxu0
        %v1713 = vadd.f32 %v1672, %v1712
        %1714 = vmatmul.f32.gmra.mxu0 %v1512
        %v1715 = vpop.f32.mrf.mxu0
        %v1716 = vadd.f32 %v1675, %v1715
        %1717 = vmatmul.f32.gmra.mxu0 %v1514
        %v1718 = vpop.f32.mrf.mxu0
        %v1719 = vadd.f32 %v1678, %v1718
        %1720 = vmatmul.f32.gmra.mxu0 %v1516
        %v1721 = vpop.f32.mrf.mxu0
        %v1722 = vadd.f32 %v1681, %v1721
        %1723 = vmatmul.f32.gmra.mxu0 %v1518
        %v1724 = vpop.f32.mrf.mxu0
        %v1725 = vadd.f32 %v1684, %v1724
        %1726 = vmatmul.f32.gmra.mxu0 %v1520
        %v1727 = vpop.f32.mrf.mxu0
        %v1728 = vadd.f32 %v1687, %v1727
        %1729 = vmatmul.f32.gmra.mxu0 %v1522
        %v1730 = vpop.f32.mrf.mxu0
        %v1731 = vadd.f32 %v1690, %v1730
        %1732 = vdwg.mxu0
        %s1733 = scalar_lea.vmem %s327, 128 [#allocation9]
        %1734 = vst [vmem:[%s1733] sm:$0xff] %v1507
        %1735 = vst [vmem:[%s1733 + $0x8] sm:$0xff] %v1508
        %1736 = vst [vmem:[%s1733 + $0x10] sm:$0xff] %v1509
        %1737 = vst [vmem:[%s1733 + $0x18] sm:$0xff] %v1510
        %1738 = vst [vmem:[%s1733 + $0x20] sm:$0xff] %v1511
        %1739 = vst [vmem:[%s1733 + $0x28] sm:$0xff] %v1512
        %1740 = vst [vmem:[%s1733 + $0x30] sm:$0xff] %v1513
        %1741 = vst [vmem:[%s1733 + $0x38] sm:$0xff] %v1514
        %1742 = vst [vmem:[%s1733 + $0x40] sm:$0xff] %v1515
        %1743 = vst [vmem:[%s1733 + $0x48] sm:$0xff] %v1516
        %1744 = vst [vmem:[%s1733 + $0x50] sm:$0xff] %v1517
        %1745 = vst [vmem:[%s1733 + $0x58] sm:$0xff] %v1518
        %1746 = vst [vmem:[%s1733 + $0x60] sm:$0xff] %v1519
        %1747 = vst [vmem:[%s1733 + $0x68] sm:$0xff] %v1520
        %1748 = vst [vmem:[%s1733 + $0x70] sm:$0xff] %v1521
        %1749 = vst [vmem:[%s1733 + $0x78] sm:$0xff] %v1522
        %1758 = vrot.lane.b32.xlu0 %v1710, 64
        %v1759 = vpop.permute.xlu0 %1758
        %1760 = vrot.lane.b32.xlu0 %v1713, 64
        %v1761 = vpop.permute.xlu0 %1760
        %1762 = vrot.lane.b32.xlu0 %v1716, 64
        %v1763 = vpop.permute.xlu0 %1762
        %1764 = vrot.lane.b32.xlu0 %v1719, 64
        %v1765 = vpop.permute.xlu0 %1764
        %1766 = vrot.lane.b32.xlu0 %v1722, 64
        %v1767 = vpop.permute.xlu0 %1766
        %1768 = vrot.lane.b32.xlu0 %v1725, 64
        %v1769 = vpop.permute.xlu0 %1768
        %1770 = vrot.lane.b32.xlu0 %v1728, 64
        %v1771 = vpop.permute.xlu0 %1770
        %1772 = vrot.lane.b32.xlu0 %v1731, 64
        %v1773 = vpop.permute.xlu0 %1772
        %v1782 = vsel %vm412, %v898, %v1759
        %v1783 = vsel %vm412, %v901, %v1761
        %v1784 = vsel %vm412, %v904, %v1763
        %v1785 = vsel %vm412, %v907, %v1765
        %v1786 = vsel %vm412, %v910, %v1767
        %v1787 = vsel %vm412, %v913, %v1769
        %v1788 = vsel %vm412, %v916, %v1771
        %v1789 = vsel %vm412, %v919, %v1773
        %1790 = vst [vmem:[%s320] sm:$0xff] %v1782
        %1791 = vst [vmem:[%s320 + $0x8] sm:$0xff] %v1783
        %1792 = vst [vmem:[%s320 + $0x10] sm:$0xff] %v1784
        %1793 = vst [vmem:[%s320 + $0x18] sm:$0xff] %v1785
        %1794 = vst [vmem:[%s320 + $0x20] sm:$0xff] %v1786
        %1795 = vst [vmem:[%s320 + $0x28] sm:$0xff] %v1787
        %1796 = vst [vmem:[%s320 + $0x30] sm:$0xff] %v1788
        %1797 = vst [vmem:[%s320 + $0x38] sm:$0xff] %v1789
        %s1798 = sand.u32 %s130, 1
        %s1799 = scalar_lea.sflag [#allocation4], %s1798
        %s1800 = sand.u32 %s130, 1
        %s1801 = smul.addr %s1800, 64
        %s1802 = scalar_lea.vmem [#allocation8], %s1801
        %s1803 = sand.u32 %s158, 1
        %s1804 = scalar_lea.sflag [#allocation10], %s1803
        %s1805 = sand.u32 %s158, 1
        %s1806 = smul.addr %s1805, 256
        %s1807 = scalar_lea.vmem [#allocation9], %s1806
        // Predicated region
        $region45: #{tpu_custom_call.1} parent=31 // pred_check
          %p1808 = pneg %p140
        $region46: #{tpu_custom_call.1} parent=31 // pred_check_branch
          %1810 = sbr.rel (%p1808) target = $region48
        $region47: #{tpu_custom_call.1} parent=31 // pred_region
          %s1811 = smul.u32 8, %s33
          %1813 = vsyncadd %s1799, 0
          %s1814 = smul.addr %s1811, 2
          %s1815 = sadd.s32 %s32, %s1814
          %s1816 = smul.addr %s1815, 8
          %s1817 = scalar_lea.hbm %s3, %s1816
          %s1818 = sshll.u32 %s1802, 4
          %s1819 = int_to_ptr.vmem [resolvable:$true] %s1818
          %s1820 = sshll.u32 %s1817, 4
          %s1821 = int_to_ptr.hbm [resolvable:$true] %s1820
          %1826 = dma.vmem_to_hbm [thread:$0]  %s1819, 1024, %s1821, %s1799, 128, 256, 8
        $region48: #{tpu_custom_call.1} parent=31 // pred_fallthru
          _
        // Predicated region
        $region49: #{tpu_custom_call.1} parent=31 // pred_check
          %p1827 = pneg %p168
        $region50: #{tpu_custom_call.1} parent=31 // pred_check_branch
          %1829 = sbr.rel (%p1827) target = $region52
        $region51: #{tpu_custom_call.1} parent=31 // pred_region
          #allocation12 [shape = 'u32[6]{0}', space=smem, size = 0x18, scoped, tag = 'DMA stride descriptor']
          %s1830 = smul.u32 2, %s32
          %s1831 = smul.u32 8, %s33
          %1833 = vsyncadd %s1804, 0
          %s1834 = smul.addr %s1831, 2
          %s1835 = smul.addr %s1830, 32
          %s1836 = sadd.s32 %s1834, %s1835
          %s1837 = smul.addr %s1836, 8
          %s1838 = scalar_lea.hbm %s4, %s1837
          %s1840 = sshll.u32 1, 14
          %s1841 = sxor.u32 4294967295, %s1840
          %s1844 = sshll.u32 7, 18
          %s1845 = sxor.u32 4294967295, %s1844
          %s1846 = sand.u32 0, %s1845
          %s1848 = sor.u32 %s1846, 0
          %s1849 = sshll.u32 %s1807, 4
          %s1850 = int_to_ptr.vmem [resolvable:$true] %s1849
          %s1851 = sshll.u32 %s1838, 4
          %s1852 = int_to_ptr.hbm [resolvable:$true] %s1851
          %1858 = sst [smem:[#allocation12]] 2048
          %s1859 = scalar_lea.smem [#allocation12], 1
          %1860 = sst [smem:[%s1859]] 4096
          %s1861 = scalar_lea.smem [#allocation12], 2
          %1862 = sst [smem:[%s1861]] 8
          %s1863 = scalar_lea.smem [#allocation12], 3
          %1864 = sst [smem:[%s1863]] 256
          %s1865 = scalar_lea.smem [#allocation12], 4
          %1866 = sst [smem:[%s1865]] 256
          %s1867 = scalar_lea.smem [#allocation12], 5
          %1868 = sst [smem:[%s1867]] 16
          %1870 = dma.general %s1850, 4096, %s1852, %s1804, [#allocation11], [#allocation12], %s1848, 0
        $region52: #{tpu_custom_call.1} parent=31 // pred_fallthru
          _
      $region32: #{tpu_custom_call.1} parent=5 // pred_fallthru
        _
      %p1871 = scmp.le.s32.totalorder 2, %s23
      // Predicated region
      $region53: #{tpu_custom_call.1} parent=5 // pred_check
        %p1872 = pneg %p1871
      $region54: #{tpu_custom_call.1} parent=5 // pred_check_branch
        %1874 = sbr.rel (%p1872) target = $region56
      $region55: #{tpu_custom_call.1} parent=5 // pred_region
        %s1875 = ssub.s32 %s23, 2
        // Predicated region
        $region57: #{tpu_custom_call.1} parent=55 // pred_check
          %p1876 = pneg %p146
        $region58: #{tpu_custom_call.1} parent=55 // pred_check_branch
          %1878 = sbr.rel (%p1876) target = $region60
        $region59: #{tpu_custom_call.1} parent=55 // pred_region
          %s1879 = sand.u32 %s131, 1
          %s1880 = scalar_lea.sflag [#allocation4], %s1879
          %s1881 = sand.u32 %s131, 1
          %s1882 = smul.addr %s1881, 64
          %s1883 = scalar_lea.vmem [#allocation8], %s1882
          %1885 = dma.done %s1880, 1024
        $region60: #{tpu_custom_call.1} parent=55 // pred_fallthru
          _
        // Predicated region
        $region61: #{tpu_custom_call.1} parent=55 // pred_check
          %p1886 = pneg %p174
        $region62: #{tpu_custom_call.1} parent=55 // pred_check_branch
          %1888 = sbr.rel (%p1886) target = $region64
        $region63: #{tpu_custom_call.1} parent=55 // pred_region
          %s1889 = sand.u32 %s159, 1
          %s1890 = scalar_lea.sflag [#allocation10], %s1889
          %s1891 = sand.u32 %s159, 1
          %s1892 = smul.addr %s1891, 256
          %s1893 = scalar_lea.vmem [#allocation9], %s1892
          %1895 = dma.done %s1890, 4096
        $region64: #{tpu_custom_call.1} parent=55 // pred_fallthru
          _
      $region56: #{tpu_custom_call.1} parent=5 // pred_fallthru
        _
    $region6: #{tpu_custom_call.1} parent=1 // loop_footer
      %s27 = sadd.s32 1, %s23
    $region7: #{tpu_custom_call.1} parent=1 // loop_footer_branch
      %22 = sbr.rel target = $region3
    $region8: #{tpu_custom_call.1} parent=1 // loop_exit
      _
    %1896 = vsyncpa [#allocation3], 1
    %s1897 = scalar_lea.sflag [#allocation3], 1
    %1898 = vsyncpa %s1897, 1
    %1899 = vsyncpa [#allocation6], 1
    %s1900 = scalar_lea.sflag [#allocation6], 1
    %1901 = vsyncpa %s1900, 1
    %1902 = vsyncpa [#allocation4], 1
    %s1903 = scalar_lea.sflag [#allocation4], 1
    %1904 = vsyncpa %s1903, 1
    %1905 = vsyncpa [#allocation10], 1
    %s1906 = scalar_lea.sflag [#allocation10], 1
    %1907 = vsyncpa %s1906, 1

</llo_original>
